<compile_context>
chip_gen: v5e
topology: v5e:2x2
jax: 0.10.0
libtpu: 0.0.40
codegen_flags: <defaults>
</compile_context>

<pallas_src>
import math
import functools

import jax
import jax.numpy as jnp
from jax.experimental import pallas as pl
from jax.experimental.pallas import tpu as pltpu


def _skip_mha_kernel(x_ref, wqkv_ref, wo_ref, mask_ref, o_ref, heads_ref, *,
                     n_heads, key_dim, val_dim):
    # x_ref    : (M, D)                M = batch_block * N rows of this grid step
    # wqkv_ref : (D, 2*H*Dk + H*Dv)    fused Wq|Wk|Wv (Wq pre-scaled by 1/sqrt(Dk))
    # wo_ref   : (H*Dv, E)             fused output projection (E == D)
    # mask_ref : (M, M)                additive block-diagonal mask (0 / -1e30), f32
    # o_ref    : (M, E)                x + MHA(x)
    # heads_ref: (M, H*Dv)             VMEM scratch for concatenated head outputs
    H, Dk, Dv = n_heads, key_dim, val_dim
    HK, HV = H * Dk, H * Dv
    dt = x_ref.dtype

    # Single fused Q|K|V projection: native-dtype operands, f32 accumulation.
    qkv = jnp.dot(x_ref[...], wqkv_ref[...],
                  preferred_element_type=jnp.float32)        # (M, 2*HK + HV)
    q_all = qkv[:, :HK].astype(dt)          # already scaled by 1/sqrt(Dk)
    k_all = qkv[:, HK:2 * HK].astype(dt)
    v_all = qkv[:, 2 * HK:].astype(dt)

    mask = mask_ref[...]                    # (M, M) f32 additive mask

    nt_dims = (((1,), (1,)), ((), ()))      # contract last dim of both: q @ k^T
    for h in range(H):                      # small static head loop
        q_h = q_all[:, h * Dk:(h + 1) * Dk]
        k_h = k_all[:, h * Dk:(h + 1) * Dk]
        v_h = v_all[:, h * Dv:(h + 1) * Dv]

        # Scores for all graphs in the block at once; the block-diagonal mask
        # keeps attention within each graph (same semantics as per-batch softmax).
        compat = jax.lax.dot_general(
            q_h, k_h, nt_dims, preferred_element_type=jnp.float32) + mask  # (M, M)

        m = jnp.max(compat, axis=-1, keepdims=True)
        p = jnp.exp(compat - m)
        denom = jnp.sum(p, axis=-1, keepdims=True)
        attn = (p * pl.reciprocal(denom, approx=True)).astype(dt)   # EUP slot

        # Write this head's output straight into the scratch slab (no concat tree).
        heads_ref[:, h * Dv:(h + 1) * Dv] = jnp.dot(
            attn, v_h, preferred_element_type=jnp.float32).astype(heads_ref.dtype)

    # Single fused output projection + residual (SkipConnection).  x is re-loaded
    # from its ref here so no f32 copy of it stays live through the head loop.
    proj = jnp.dot(heads_ref[...], wo_ref[...],
                   preferred_element_type=jnp.float32)               # (M, E)
    o_ref[...] = (x_ref[...].astype(jnp.float32) + proj).astype(o_ref.dtype)


def _vmem_estimate(bb, N, D, H, Dk, Dv, itemsize):
    """Rough per-grid-step live-bytes estimate (blocks double-buffered by Pallas)."""
    M = bb * N
    qkv_cols = 2 * H * Dk + H * Dv
    b = 2 * itemsize * M * D                          # x block (double-buffered)
    b += 2 * itemsize * M * D                         # out block (E == D)
    b += itemsize * M * H * Dv                        # heads scratch
    b += 4 * M * qkv_cols                             # fused q|k|v f32 accumulator
    b += 3 * 4 * M * M                                # scores / exp / mask temporaries
    b += 4 * M * D                                    # f32 proj + residual
    b += 2 * itemsize * (D * qkv_cols + H * Dv * D)   # weight slabs
    b += 2 * 4 * M * M                                # mask input block
    return b


def _pick_batch_block(B, N, D, H, Dk, Dv, itemsize, budget_bytes):
    """Largest legal batch block that fits the VMEM budget, preferring >=2 grid steps."""
    legal = [d for d in range(1, B + 1)
             if B % d == 0 and ((d * N) % 8 == 0 or d == B)]
    fitting = [d for d in legal
               if _vmem_estimate(d, N, D, H, Dk, Dv, itemsize) <= budget_bytes]
    if not fitting:
        fitting = [min(legal)]
    multi_step = [d for d in fitting if B // d >= 2]   # keep both v7x TCs busy
    pool = multi_step or fitting
    return max(pool)


def skip_connection_mha(x, wq, wk, wv, wo, *, batch_block=None):
    """SkipConnection(MultiHeadAttention) forward.

    x : (B, N, D)   node embeddings (q = h = x)
    wq, wk : (H, D, Dk)   wv : (H, D, Dv)   wo : (H, Dv, E)  with E == D.
    Returns x + MHA(x), shape (B, N, E).
    """
    B, N, D = x.shape
    H, _, Dk = wq.shape
    _, Dv, E = wo.shape
    assert D == E, "SkipConnection requires input_dim == embed_dim"
    norm_factor = 1.0 / math.sqrt(Dk)
    itemsize = jnp.dtype(x.dtype).itemsize

    # Conservative budget: safe under v7x's 64 MiB physical VMEM and well above
    # v5e's 16 MiB scoped default (which we raise via vmem_limit_bytes below).
    budget = 40 * 1024 * 1024
    if batch_block is None:
        batch_block = _pick_batch_block(B, N, D, H, Dk, Dv, itemsize, budget)
    bb = batch_block
    assert B % bb == 0, "batch_block must divide B"
    assert (bb * N) % 8 == 0 or bb == B, "block rows must be a multiple of 8"
    M = bb * N
    qkv_cols = 2 * H * Dk + H * Dv

    # Lane-dense fused weight slabs, built once in the wrapper.  The 1/sqrt(Dk)
    # scale is folded into the Wq columns here (no per-step multiply in-kernel).
    wq_all = jnp.transpose(wq, (1, 0, 2)).reshape(D, H * Dk) * norm_factor
    wk_all = jnp.transpose(wk, (1, 0, 2)).reshape(D, H * Dk)
    wv_all = jnp.transpose(wv, (1, 0, 2)).reshape(D, H * Dv)
    wqkv = jnp.concatenate([wq_all, wk_all, wv_all], axis=1).astype(x.dtype)
    wo_all = wo.reshape(H * Dv, E).astype(x.dtype)

    # Block-diagonal additive mask: graphs folded into one score matmul per head
    # must not attend across graph boundaries.  Zeros when bb == 1.
    bid = jnp.arange(M, dtype=jnp.int32) // N
    mask = jnp.where(bid[:, None] == bid[None, :], 0.0, -1e30).astype(jnp.float32)

    # Flatten batch & sequence so one grid step sees bb*N contiguous rows.
    x2d = x.reshape(B * N, D)

    vmem_est = _vmem_estimate(bb, N, D, H, Dk, Dv, itemsize)
    vmem_limit = int(min(64 * 1024 * 1024, max(16 * 1024 * 1024, 2 * vmem_est)))

    kernel = functools.partial(_skip_mha_kernel, n_heads=H, key_dim=Dk, val_dim=Dv)

    out2d = pl.pallas_call(
        kernel,
        out_shape=jax.ShapeDtypeStruct((B * N, E), x.dtype),
        grid_spec=pltpu.PrefetchScalarGridSpec(
            num_scalar_prefetch=0,
            grid=(B // bb,),
            in_specs=[
                pl.BlockSpec((M, D), lambda i: (i, 0)),
                pl.BlockSpec((D, qkv_cols), lambda i: (0, 0)),
                pl.BlockSpec((H * Dv, E), lambda i: (0, 0)),
                pl.BlockSpec((M, M), lambda i: (0, 0)),
            ],
            out_specs=pl.BlockSpec((M, E), lambda i: (i, 0)),
            scratch_shapes=[pltpu.VMEM((M, H * Dv), x.dtype)],
        ),
        compiler_params=pltpu.CompilerParams(
            dimension_semantics=("parallel",),
            vmem_limit_bytes=vmem_limit),
    )(x2d, wqkv, wo_all, mask)

    return out2d.reshape(B, N, E)


def _mha_reference(x, wq, wk, wv, wo):
    # Pure-JAX reference mirroring the PyTorch MultiHeadAttention forward (mask=None).
    H, D, Dk = wq.shape
    _, Dv, E = wo.shape
    norm = 1.0 / math.sqrt(Dk)
    Q = jnp.einsum("bnd,hdk->hbnk", x, wq)
    K = jnp.einsum("bgd,hdk->hbgk", x, wk)
    V = jnp.einsum("bgd,hdv->hbgv", x, wv)
    compat = norm * jnp.einsum("hbnk,hbgk->hbng", Q, K)
    attn = jax.nn.softmax(compat, axis=-1)
    heads = jnp.einsum("hbng,hbgv->hbnv", attn, V)            # (H, B, N, Dv)
    B, N = x.shape[0], x.shape[1]
    heads_c = jnp.transpose(heads, (1, 2, 0, 3)).reshape(B * N, H * Dv)
    out = heads_c @ wo.reshape(H * Dv, E)
    return out.reshape(B, N, E)


if __name__ == "__main__":
    # Module defaults from the graph encoder: embed_dim=128, n_heads=8 (lane-dense
    # output), with a small batch/sequence for the test.
    B, N = 4, 8
    n_heads = 8
    embed_dim = 128
    key_dim = embed_dim // n_heads   # 16
    val_dim = embed_dim // n_heads   # 16

    key = jax.random.PRNGKey(0)
    k_x, k_wq, k_wk, k_wv, k_wo = jax.random.split(key, 5)

    x = jax.random.normal(k_x, (B, N, embed_dim), dtype=jnp.float32)

    # init_parameters(): uniform(-stdv, stdv), stdv = 1/sqrt(last dim)
    def init_w(k, shape):
        stdv = 1.0 / math.sqrt(shape[-1])
        return jax.random.uniform(k, shape, jnp.float32, -stdv, stdv)

    wq = init_w(k_wq, (n_heads, embed_dim, key_dim))
    wk = init_w(k_wk, (n_heads, embed_dim, key_dim))
    wv = init_w(k_wv, (n_heads, embed_dim, val_dim))
    wo = init_w(k_wo, (n_heads, val_dim, embed_dim))

    out = skip_connection_mha(x, wq, wk, wv, wo)
    out = jax.block_until_ready(out)

    ref = x + _mha_reference(x, wq, wk, wv, wo)   # SkipConnection semantics
    assert out.shape == (B, N, embed_dim)
    # Tolerance covers MXU default-precision f32 matmuls (bf16 passes, same in the
    # XLA reference but with different contraction grouping) + approx reciprocal.
    assert jnp.allclose(out, ref, atol=1e-2, rtol=1e-2), "mismatch vs reference"

    print("KERNEL_OK")
</pallas_src>

<mosaic_0001>
module attributes {stable_mosaic.version = 11 : i64} {
  func.func @_skip_mha_kernel(%arg0: i32, %arg1: memref<16x128xf32, #tpu.memory_space<vmem>>, %arg2: memref<128x384xf32, #tpu.memory_space<vmem>>, %arg3: memref<128x128xf32, #tpu.memory_space<vmem>>, %arg4: memref<16x16xf32, #tpu.memory_space<vmem>>, %arg5: memref<16x128xf32, #tpu.memory_space<vmem>>, %arg6: memref<16x128xf32, #tpu.memory_space<vmem>>) attributes {dimension_semantics = [#tpu.dimension_semantics<parallel>], iteration_bounds = array<i64: 2>, scalar_prefetch = 0 : i64, scratch_operands = 1 : i64, tpu.core_type = #tpu.core_type<tc>, window_params = [{transform_indices = @transform_0, window_bounds = array<i64: 16, 128>}, {pipeline_mode = #tpu.pipeline_mode<synchronous>, transform_indices = @transform_1, window_bounds = array<i64: 128, 384>}, {pipeline_mode = #tpu.pipeline_mode<synchronous>, transform_indices = @transform_2, window_bounds = array<i64: 128, 128>}, {pipeline_mode = #tpu.pipeline_mode<synchronous>, transform_indices = @transform_3, window_bounds = array<i64: 16, 16>}, {transform_indices = @transform_4, window_bounds = array<i64: 16, 128>}]} {
    %c0 = arith.constant 0 : index
    %c0_0 = arith.constant 0 : index
    %0 = vector.load %arg1[%c0, %c0_0] : memref<16x128xf32, #tpu.memory_space<vmem>>, vector<16x128xf32>
    %c0_1 = arith.constant 0 : index
    %c0_2 = arith.constant 0 : index
    %1 = vector.load %arg2[%c0_1, %c0_2] : memref<128x384xf32, #tpu.memory_space<vmem>>, vector<128x384xf32>
    %cst = arith.constant dense<0.000000e+00> : vector<16x384xf32>
    %2 = tpu.matmul %0, %1, %cst {dimension_numbers = #tpu.dot_dimension_numbers<[1], [0], [0], [1], [0, 0, 1, 1], [], []>} : vector<16x128xf32>, vector<128x384xf32>, vector<16x384xf32> -> vector<16x384xf32>
    %3 = vector.extract_strided_slice %2 {offsets = [0, 0], sizes = [16, 128], strides = [1, 1]} : vector<16x384xf32> to vector<16x128xf32>
    %4 = vector.extract_strided_slice %2 {offsets = [0, 128], sizes = [16, 128], strides = [1, 1]} : vector<16x384xf32> to vector<16x128xf32>
    %5 = vector.extract_strided_slice %2 {offsets = [0, 256], sizes = [16, 128], strides = [1, 1]} : vector<16x384xf32> to vector<16x128xf32>
    %c0_3 = arith.constant 0 : index
    %c0_4 = arith.constant 0 : index
    %6 = vector.load %arg4[%c0_3, %c0_4] : memref<16x16xf32, #tpu.memory_space<vmem>>, vector<16x16xf32>
    %7 = vector.extract_strided_slice %3 {offsets = [0, 0], sizes = [16, 16], strides = [1, 1]} : vector<16x128xf32> to vector<16x16xf32>
    %8 = vector.extract_strided_slice %4 {offsets = [0, 0], sizes = [16, 16], strides = [1, 1]} : vector<16x128xf32> to vector<16x16xf32>
    %9 = vector.extract_strided_slice %5 {offsets = [0, 0], sizes = [16, 16], strides = [1, 1]} : vector<16x128xf32> to vector<16x16xf32>
    %cst_5 = arith.constant dense<0.000000e+00> : vector<16x16xf32>
    %10 = tpu.matmul %7, %8, %cst_5 {dimension_numbers = #tpu.dot_dimension_numbers<[1], [1], [0], [0], [0, 0, 1, 0], [], []>} : vector<16x16xf32>, vector<16x16xf32>, vector<16x16xf32> -> vector<16x16xf32>
    %11 = arith.addf %10, %6 : vector<16x16xf32>
    %cst_6 = arith.constant dense<0xFF800000> : vector<16xf32>
    %12 = vector.multi_reduction <maximumf>, %11, %cst_6 [1] : vector<16x16xf32> to vector<16xf32>
    %13 = vector.shape_cast %12 : vector<16xf32> to vector<16x1xf32>
    %14 = vector.broadcast %13 : vector<16x1xf32> to vector<16x16xf32>
    %15 = arith.subf %11, %14 : vector<16x16xf32>
    %16 = math.exp %15 : vector<16x16xf32>
    %cst_7 = arith.constant dense<0.000000e+00> : vector<16xf32>
    %17 = vector.multi_reduction <add>, %16, %cst_7 [1] : vector<16x16xf32> to vector<16xf32>
    %18 = vector.shape_cast %17 : vector<16xf32> to vector<16x1xf32>
    %19 = tpu.reciprocal %18 {approx = true} : vector<16x1xf32> -> vector<16x1xf32>
    %20 = vector.broadcast %19 : vector<16x1xf32> to vector<16x16xf32>
    %21 = arith.mulf %16, %20 : vector<16x16xf32>
    %cst_8 = arith.constant dense<0.000000e+00> : vector<16x16xf32>
    %22 = tpu.matmul %21, %9, %cst_8 {dimension_numbers = #tpu.dot_dimension_numbers<[1], [0], [0], [1], [0, 0, 1, 1], [], []>} : vector<16x16xf32>, vector<16x16xf32>, vector<16x16xf32> -> vector<16x16xf32>
    %c0_9 = arith.constant 0 : index
    %c0_10 = arith.constant 0 : index
    %23 = vector.load %arg6[%c0_9, %c0_10] : memref<16x128xf32, #tpu.memory_space<vmem>>, vector<16x16xf32>
    tpu.vector_store %arg6[%c0_9, %c0_10], %22 {strides = array<i32>} : memref<16x128xf32, #tpu.memory_space<vmem>>, vector<16x16xf32>,
    %24 = vector.extract_strided_slice %3 {offsets = [0, 16], sizes = [16, 16], strides = [1, 1]} : vector<16x128xf32> to vector<16x16xf32>
    %25 = vector.extract_strided_slice %4 {offsets = [0, 16], sizes = [16, 16], strides = [1, 1]} : vector<16x128xf32> to vector<16x16xf32>
    %26 = vector.extract_strided_slice %5 {offsets = [0, 16], sizes = [16, 16], strides = [1, 1]} : vector<16x128xf32> to vector<16x16xf32>
    %cst_11 = arith.constant dense<0.000000e+00> : vector<16x16xf32>
    %27 = tpu.matmul %24, %25, %cst_11 {dimension_numbers = #tpu.dot_dimension_numbers<[1], [1], [0], [0], [0, 0, 1, 0], [], []>} : vector<16x16xf32>, vector<16x16xf32>, vector<16x16xf32> -> vector<16x16xf32>
    %28 = arith.addf %27, %6 : vector<16x16xf32>
    %cst_12 = arith.constant dense<0xFF800000> : vector<16xf32>
    %29 = vector.multi_reduction <maximumf>, %28, %cst_12 [1] : vector<16x16xf32> to vector<16xf32>
    %30 = vector.shape_cast %29 : vector<16xf32> to vector<16x1xf32>
    %31 = vector.broadcast %30 : vector<16x1xf32> to vector<16x16xf32>
    %32 = arith.subf %28, %31 : vector<16x16xf32>
    %33 = math.exp %32 : vector<16x16xf32>
    %cst_13 = arith.constant dense<0.000000e+00> : vector<16xf32>
    %34 = vector.multi_reduction <add>, %33, %cst_13 [1] : vector<16x16xf32> to vector<16xf32>
    %35 = vector.shape_cast %34 : vector<16xf32> to vector<16x1xf32>
    %36 = tpu.reciprocal %35 {approx = true} : vector<16x1xf32> -> vector<16x1xf32>
    %37 = vector.broadcast %36 : vector<16x1xf32> to vector<16x16xf32>
    %38 = arith.mulf %33, %37 : vector<16x16xf32>
    %cst_14 = arith.constant dense<0.000000e+00> : vector<16x16xf32>
    %39 = tpu.matmul %38, %26, %cst_14 {dimension_numbers = #tpu.dot_dimension_numbers<[1], [0], [0], [1], [0, 0, 1, 1], [], []>} : vector<16x16xf32>, vector<16x16xf32>, vector<16x16xf32> -> vector<16x16xf32>
    %c0_15 = arith.constant 0 : index
    %c16 = arith.constant 16 : index
    %40 = vector.load %arg6[%c0_15, %c16] : memref<16x128xf32, #tpu.memory_space<vmem>>, vector<16x16xf32>
    tpu.vector_store %arg6[%c0_15, %c16], %39 {strides = array<i32>} : memref<16x128xf32, #tpu.memory_space<vmem>>, vector<16x16xf32>,
    %41 = vector.extract_strided_slice %3 {offsets = [0, 32], sizes = [16, 16], strides = [1, 1]} : vector<16x128xf32> to vector<16x16xf32>
    %42 = vector.extract_strided_slice %4 {offsets = [0, 32], sizes = [16, 16], strides = [1, 1]} : vector<16x128xf32> to vector<16x16xf32>
    %43 = vector.extract_strided_slice %5 {offsets = [0, 32], sizes = [16, 16], strides = [1, 1]} : vector<16x128xf32> to vector<16x16xf32>
    %cst_16 = arith.constant dense<0.000000e+00> : vector<16x16xf32>
    %44 = tpu.matmul %41, %42, %cst_16 {dimension_numbers = #tpu.dot_dimension_numbers<[1], [1], [0], [0], [0, 0, 1, 0], [], []>} : vector<16x16xf32>, vector<16x16xf32>, vector<16x16xf32> -> vector<16x16xf32>
    %45 = arith.addf %44, %6 : vector<16x16xf32>
    %cst_17 = arith.constant dense<0xFF800000> : vector<16xf32>
    %46 = vector.multi_reduction <maximumf>, %45, %cst_17 [1] : vector<16x16xf32> to vector<16xf32>
    %47 = vector.shape_cast %46 : vector<16xf32> to vector<16x1xf32>
    %48 = vector.broadcast %47 : vector<16x1xf32> to vector<16x16xf32>
    %49 = arith.subf %45, %48 : vector<16x16xf32>
    %50 = math.exp %49 : vector<16x16xf32>
    %cst_18 = arith.constant dense<0.000000e+00> : vector<16xf32>
    %51 = vector.multi_reduction <add>, %50, %cst_18 [1] : vector<16x16xf32> to vector<16xf32>
    %52 = vector.shape_cast %51 : vector<16xf32> to vector<16x1xf32>
    %53 = tpu.reciprocal %52 {approx = true} : vector<16x1xf32> -> vector<16x1xf32>
    %54 = vector.broadcast %53 : vector<16x1xf32> to vector<16x16xf32>
    %55 = arith.mulf %50, %54 : vector<16x16xf32>
    %cst_19 = arith.constant dense<0.000000e+00> : vector<16x16xf32>
    %56 = tpu.matmul %55, %43, %cst_19 {dimension_numbers = #tpu.dot_dimension_numbers<[1], [0], [0], [1], [0, 0, 1, 1], [], []>} : vector<16x16xf32>, vector<16x16xf32>, vector<16x16xf32> -> vector<16x16xf32>
    %c0_20 = arith.constant 0 : index
    %c32 = arith.constant 32 : index
    %57 = vector.load %arg6[%c0_20, %c32] : memref<16x128xf32, #tpu.memory_space<vmem>>, vector<16x16xf32>
    tpu.vector_store %arg6[%c0_20, %c32], %56 {strides = array<i32>} : memref<16x128xf32, #tpu.memory_space<vmem>>, vector<16x16xf32>,
    %58 = vector.extract_strided_slice %3 {offsets = [0, 48], sizes = [16, 16], strides = [1, 1]} : vector<16x128xf32> to vector<16x16xf32>
    %59 = vector.extract_strided_slice %4 {offsets = [0, 48], sizes = [16, 16], strides = [1, 1]} : vector<16x128xf32> to vector<16x16xf32>
    %60 = vector.extract_strided_slice %5 {offsets = [0, 48], sizes = [16, 16], strides = [1, 1]} : vector<16x128xf32> to vector<16x16xf32>
    %cst_21 = arith.constant dense<0.000000e+00> : vector<16x16xf32>
    %61 = tpu.matmul %58, %59, %cst_21 {dimension_numbers = #tpu.dot_dimension_numbers<[1], [1], [0], [0], [0, 0, 1, 0], [], []>} : vector<16x16xf32>, vector<16x16xf32>, vector<16x16xf32> -> vector<16x16xf32>
    %62 = arith.addf %61, %6 : vector<16x16xf32>
    %cst_22 = arith.constant dense<0xFF800000> : vector<16xf32>
    %63 = vector.multi_reduction <maximumf>, %62, %cst_22 [1] : vector<16x16xf32> to vector<16xf32>
    %64 = vector.shape_cast %63 : vector<16xf32> to vector<16x1xf32>
    %65 = vector.broadcast %64 : vector<16x1xf32> to vector<16x16xf32>
    %66 = arith.subf %62, %65 : vector<16x16xf32>
    %67 = math.exp %66 : vector<16x16xf32>
    %cst_23 = arith.constant dense<0.000000e+00> : vector<16xf32>
    %68 = vector.multi_reduction <add>, %67, %cst_23 [1] : vector<16x16xf32> to vector<16xf32>
    %69 = vector.shape_cast %68 : vector<16xf32> to vector<16x1xf32>
    %70 = tpu.reciprocal %69 {approx = true} : vector<16x1xf32> -> vector<16x1xf32>
    %71 = vector.broadcast %70 : vector<16x1xf32> to vector<16x16xf32>
    %72 = arith.mulf %67, %71 : vector<16x16xf32>
    %cst_24 = arith.constant dense<0.000000e+00> : vector<16x16xf32>
    %73 = tpu.matmul %72, %60, %cst_24 {dimension_numbers = #tpu.dot_dimension_numbers<[1], [0], [0], [1], [0, 0, 1, 1], [], []>} : vector<16x16xf32>, vector<16x16xf32>, vector<16x16xf32> -> vector<16x16xf32>
    %c0_25 = arith.constant 0 : index
    %c48 = arith.constant 48 : index
    %74 = vector.load %arg6[%c0_25, %c48] : memref<16x128xf32, #tpu.memory_space<vmem>>, vector<16x16xf32>
    tpu.vector_store %arg6[%c0_25, %c48], %73 {strides = array<i32>} : memref<16x128xf32, #tpu.memory_space<vmem>>, vector<16x16xf32>,
    %75 = vector.extract_strided_slice %3 {offsets = [0, 64], sizes = [16, 16], strides = [1, 1]} : vector<16x128xf32> to vector<16x16xf32>
    %76 = vector.extract_strided_slice %4 {offsets = [0, 64], sizes = [16, 16], strides = [1, 1]} : vector<16x128xf32> to vector<16x16xf32>
    %77 = vector.extract_strided_slice %5 {offsets = [0, 64], sizes = [16, 16], strides = [1, 1]} : vector<16x128xf32> to vector<16x16xf32>
    %cst_26 = arith.constant dense<0.000000e+00> : vector<16x16xf32>
    %78 = tpu.matmul %75, %76, %cst_26 {dimension_numbers = #tpu.dot_dimension_numbers<[1], [1], [0], [0], [0, 0, 1, 0], [], []>} : vector<16x16xf32>, vector<16x16xf32>, vector<16x16xf32> -> vector<16x16xf32>
    %79 = arith.addf %78, %6 : vector<16x16xf32>
    %cst_27 = arith.constant dense<0xFF800000> : vector<16xf32>
    %80 = vector.multi_reduction <maximumf>, %79, %cst_27 [1] : vector<16x16xf32> to vector<16xf32>
    %81 = vector.shape_cast %80 : vector<16xf32> to vector<16x1xf32>
    %82 = vector.broadcast %81 : vector<16x1xf32> to vector<16x16xf32>
    %83 = arith.subf %79, %82 : vector<16x16xf32>
    %84 = math.exp %83 : vector<16x16xf32>
    %cst_28 = arith.constant dense<0.000000e+00> : vector<16xf32>
    %85 = vector.multi_reduction <add>, %84, %cst_28 [1] : vector<16x16xf32> to vector<16xf32>
    %86 = vector.shape_cast %85 : vector<16xf32> to vector<16x1xf32>
    %87 = tpu.reciprocal %86 {approx = true} : vector<16x1xf32> -> vector<16x1xf32>
    %88 = vector.broadcast %87 : vector<16x1xf32> to vector<16x16xf32>
    %89 = arith.mulf %84, %88 : vector<16x16xf32>
    %cst_29 = arith.constant dense<0.000000e+00> : vector<16x16xf32>
    %90 = tpu.matmul %89, %77, %cst_29 {dimension_numbers = #tpu.dot_dimension_numbers<[1], [0], [0], [1], [0, 0, 1, 1], [], []>} : vector<16x16xf32>, vector<16x16xf32>, vector<16x16xf32> -> vector<16x16xf32>
    %c0_30 = arith.constant 0 : index
    %c64 = arith.constant 64 : index
    %91 = vector.load %arg6[%c0_30, %c64] : memref<16x128xf32, #tpu.memory_space<vmem>>, vector<16x16xf32>
    tpu.vector_store %arg6[%c0_30, %c64], %90 {strides = array<i32>} : memref<16x128xf32, #tpu.memory_space<vmem>>, vector<16x16xf32>,
    %92 = vector.extract_strided_slice %3 {offsets = [0, 80], sizes = [16, 16], strides = [1, 1]} : vector<16x128xf32> to vector<16x16xf32>
    %93 = vector.extract_strided_slice %4 {offsets = [0, 80], sizes = [16, 16], strides = [1, 1]} : vector<16x128xf32> to vector<16x16xf32>
    %94 = vector.extract_strided_slice %5 {offsets = [0, 80], sizes = [16, 16], strides = [1, 1]} : vector<16x128xf32> to vector<16x16xf32>
    %cst_31 = arith.constant dense<0.000000e+00> : vector<16x16xf32>
    %95 = tpu.matmul %92, %93, %cst_31 {dimension_numbers = #tpu.dot_dimension_numbers<[1], [1], [0], [0], [0, 0, 1, 0], [], []>} : vector<16x16xf32>, vector<16x16xf32>, vector<16x16xf32> -> vector<16x16xf32>
    %96 = arith.addf %95, %6 : vector<16x16xf32>
    %cst_32 = arith.constant dense<0xFF800000> : vector<16xf32>
    %97 = vector.multi_reduction <maximumf>, %96, %cst_32 [1] : vector<16x16xf32> to vector<16xf32>
    %98 = vector.shape_cast %97 : vector<16xf32> to vector<16x1xf32>
    %99 = vector.broadcast %98 : vector<16x1xf32> to vector<16x16xf32>
    %100 = arith.subf %96, %99 : vector<16x16xf32>
    %101 = math.exp %100 : vector<16x16xf32>
    %cst_33 = arith.constant dense<0.000000e+00> : vector<16xf32>
    %102 = vector.multi_reduction <add>, %101, %cst_33 [1] : vector<16x16xf32> to vector<16xf32>
    %103 = vector.shape_cast %102 : vector<16xf32> to vector<16x1xf32>
    %104 = tpu.reciprocal %103 {approx = true} : vector<16x1xf32> -> vector<16x1xf32>
    %105 = vector.broadcast %104 : vector<16x1xf32> to vector<16x16xf32>
    %106 = arith.mulf %101, %105 : vector<16x16xf32>
    %cst_34 = arith.constant dense<0.000000e+00> : vector<16x16xf32>
    %107 = tpu.matmul %106, %94, %cst_34 {dimension_numbers = #tpu.dot_dimension_numbers<[1], [0], [0], [1], [0, 0, 1, 1], [], []>} : vector<16x16xf32>, vector<16x16xf32>, vector<16x16xf32> -> vector<16x16xf32>
    %c0_35 = arith.constant 0 : index
    %c80 = arith.constant 80 : index
    %108 = vector.load %arg6[%c0_35, %c80] : memref<16x128xf32, #tpu.memory_space<vmem>>, vector<16x16xf32>
    tpu.vector_store %arg6[%c0_35, %c80], %107 {strides = array<i32>} : memref<16x128xf32, #tpu.memory_space<vmem>>, vector<16x16xf32>,
    %109 = vector.extract_strided_slice %3 {offsets = [0, 96], sizes = [16, 16], strides = [1, 1]} : vector<16x128xf32> to vector<16x16xf32>
    %110 = vector.extract_strided_slice %4 {offsets = [0, 96], sizes = [16, 16], strides = [1, 1]} : vector<16x128xf32> to vector<16x16xf32>
    %111 = vector.extract_strided_slice %5 {offsets = [0, 96], sizes = [16, 16], strides = [1, 1]} : vector<16x128xf32> to vector<16x16xf32>
    %cst_36 = arith.constant dense<0.000000e+00> : vector<16x16xf32>
    %112 = tpu.matmul %109, %110, %cst_36 {dimension_numbers = #tpu.dot_dimension_numbers<[1], [1], [0], [0], [0, 0, 1, 0], [], []>} : vector<16x16xf32>, vector<16x16xf32>, vector<16x16xf32> -> vector<16x16xf32>
    %113 = arith.addf %112, %6 : vector<16x16xf32>
    %cst_37 = arith.constant dense<0xFF800000> : vector<16xf32>
    %114 = vector.multi_reduction <maximumf>, %113, %cst_37 [1] : vector<16x16xf32> to vector<16xf32>
    %115 = vector.shape_cast %114 : vector<16xf32> to vector<16x1xf32>
    %116 = vector.broadcast %115 : vector<16x1xf32> to vector<16x16xf32>
    %117 = arith.subf %113, %116 : vector<16x16xf32>
    %118 = math.exp %117 : vector<16x16xf32>
    %cst_38 = arith.constant dense<0.000000e+00> : vector<16xf32>
    %119 = vector.multi_reduction <add>, %118, %cst_38 [1] : vector<16x16xf32> to vector<16xf32>
    %120 = vector.shape_cast %119 : vector<16xf32> to vector<16x1xf32>
    %121 = tpu.reciprocal %120 {approx = true} : vector<16x1xf32> -> vector<16x1xf32>
    %122 = vector.broadcast %121 : vector<16x1xf32> to vector<16x16xf32>
    %123 = arith.mulf %118, %122 : vector<16x16xf32>
    %cst_39 = arith.constant dense<0.000000e+00> : vector<16x16xf32>
    %124 = tpu.matmul %123, %111, %cst_39 {dimension_numbers = #tpu.dot_dimension_numbers<[1], [0], [0], [1], [0, 0, 1, 1], [], []>} : vector<16x16xf32>, vector<16x16xf32>, vector<16x16xf32> -> vector<16x16xf32>
    %c0_40 = arith.constant 0 : index
    %c96 = arith.constant 96 : index
    %125 = vector.load %arg6[%c0_40, %c96] : memref<16x128xf32, #tpu.memory_space<vmem>>, vector<16x16xf32>
    tpu.vector_store %arg6[%c0_40, %c96], %124 {strides = array<i32>} : memref<16x128xf32, #tpu.memory_space<vmem>>, vector<16x16xf32>,
    %126 = vector.extract_strided_slice %3 {offsets = [0, 112], sizes = [16, 16], strides = [1, 1]} : vector<16x128xf32> to vector<16x16xf32>
    %127 = vector.extract_strided_slice %4 {offsets = [0, 112], sizes = [16, 16], strides = [1, 1]} : vector<16x128xf32> to vector<16x16xf32>
    %128 = vector.extract_strided_slice %5 {offsets = [0, 112], sizes = [16, 16], strides = [1, 1]} : vector<16x128xf32> to vector<16x16xf32>
    %cst_41 = arith.constant dense<0.000000e+00> : vector<16x16xf32>
    %129 = tpu.matmul %126, %127, %cst_41 {dimension_numbers = #tpu.dot_dimension_numbers<[1], [1], [0], [0], [0, 0, 1, 0], [], []>} : vector<16x16xf32>, vector<16x16xf32>, vector<16x16xf32> -> vector<16x16xf32>
    %130 = arith.addf %129, %6 : vector<16x16xf32>
    %cst_42 = arith.constant dense<0xFF800000> : vector<16xf32>
    %131 = vector.multi_reduction <maximumf>, %130, %cst_42 [1] : vector<16x16xf32> to vector<16xf32>
    %132 = vector.shape_cast %131 : vector<16xf32> to vector<16x1xf32>
    %133 = vector.broadcast %132 : vector<16x1xf32> to vector<16x16xf32>
    %134 = arith.subf %130, %133 : vector<16x16xf32>
    %135 = math.exp %134 : vector<16x16xf32>
    %cst_43 = arith.constant dense<0.000000e+00> : vector<16xf32>
    %136 = vector.multi_reduction <add>, %135, %cst_43 [1] : vector<16x16xf32> to vector<16xf32>
    %137 = vector.shape_cast %136 : vector<16xf32> to vector<16x1xf32>
    %138 = tpu.reciprocal %137 {approx = true} : vector<16x1xf32> -> vector<16x1xf32>
    %139 = vector.broadcast %138 : vector<16x1xf32> to vector<16x16xf32>
    %140 = arith.mulf %135, %139 : vector<16x16xf32>
    %cst_44 = arith.constant dense<0.000000e+00> : vector<16x16xf32>
    %141 = tpu.matmul %140, %128, %cst_44 {dimension_numbers = #tpu.dot_dimension_numbers<[1], [0], [0], [1], [0, 0, 1, 1], [], []>} : vector<16x16xf32>, vector<16x16xf32>, vector<16x16xf32> -> vector<16x16xf32>
    %c0_45 = arith.constant 0 : index
    %c112 = arith.constant 112 : index
    %142 = vector.load %arg6[%c0_45, %c112] : memref<16x128xf32, #tpu.memory_space<vmem>>, vector<16x16xf32>
    tpu.vector_store %arg6[%c0_45, %c112], %141 {strides = array<i32>} : memref<16x128xf32, #tpu.memory_space<vmem>>, vector<16x16xf32>,
    %c0_46 = arith.constant 0 : index
    %c0_47 = arith.constant 0 : index
    %143 = vector.load %arg6[%c0_46, %c0_47] : memref<16x128xf32, #tpu.memory_space<vmem>>, vector<16x128xf32>
    %c0_48 = arith.constant 0 : index
    %c0_49 = arith.constant 0 : index
    %144 = vector.load %arg3[%c0_48, %c0_49] : memref<128x128xf32, #tpu.memory_space<vmem>>, vector<128x128xf32>
    %cst_50 = arith.constant dense<0.000000e+00> : vector<16x128xf32>
    %145 = tpu.matmul %143, %144, %cst_50 {dimension_numbers = #tpu.dot_dimension_numbers<[1], [0], [0], [1], [0, 0, 1, 1], [], []>} : vector<16x128xf32>, vector<128x128xf32>, vector<16x128xf32> -> vector<16x128xf32>
    %c0_51 = arith.constant 0 : index
    %c0_52 = arith.constant 0 : index
    %146 = vector.load %arg1[%c0_51, %c0_52] : memref<16x128xf32, #tpu.memory_space<vmem>>, vector<16x128xf32>
    %147 = arith.addf %146, %145 : vector<16x128xf32>
    %c0_53 = arith.constant 0 : index
    %c0_54 = arith.constant 0 : index
    %148 = vector.load %arg5[%c0_53, %c0_54] : memref<16x128xf32, #tpu.memory_space<vmem>>, vector<16x128xf32>
    tpu.vector_store %arg5[%c0_53, %c0_54], %147 {strides = array<i32>} : memref<16x128xf32, #tpu.memory_space<vmem>>, vector<16x128xf32>,
    return
  }
  func.func @transform_0(%arg0: i32) -> (i32, i32) {
    %c0_i32 = arith.constant 0 : i32
    %c0_i32_0 = arith.constant 0 : i32
    return %arg0, %c0_i32 : i32, i32
  }
  func.func @transform_1(%arg0: i32) -> (i32, i32) {
    %c0_i32 = arith.constant 0 : i32
    %c0_i32_0 = arith.constant 0 : i32
    %c0_i32_1 = arith.constant 0 : i32
    return %c0_i32, %c0_i32_0 : i32, i32
  }
  func.func @transform_2(%arg0: i32) -> (i32, i32) {
    %c0_i32 = arith.constant 0 : i32
    %c0_i32_0 = arith.constant 0 : i32
    %c0_i32_1 = arith.constant 0 : i32
    return %c0_i32, %c0_i32_0 : i32, i32
  }
  func.func @transform_3(%arg0: i32) -> (i32, i32) {
    %c0_i32 = arith.constant 0 : i32
    %c0_i32_0 = arith.constant 0 : i32
    %c0_i32_1 = arith.constant 0 : i32
    return %c0_i32, %c0_i32_0 : i32, i32
  }
  func.func @transform_4(%arg0: i32) -> (i32, i32) {
    %c0_i32 = arith.constant 0 : i32
    %c0_i32_0 = arith.constant 0 : i32
    return %arg0, %c0_i32 : i32, i32
  }
}

</mosaic_0001>

<llo_original>
// kernel: tpu_custom_call.1
$region0: #{tpu_custom_call.1}
  #allocation0 [shape = 'u32[]', space=smem, size = 0x4, offset = 0x4, fixed_abs, tag = 'smem constant byte address 0x4 - core index']
  #allocation1 [shape = 'u32[72,128]{1,0:T(1,128)}', space=vmem, size = 0x9000, scoped, tag = 'internal scratch']
  #allocation2 [shape = 'f32[16,128]{1,0:T(8,128)}', space=vmem, size = 0x2000, scoped, tag = 'scratch operand']
  %s0 = inlined_call_operand.hbm [shape: f32[32,128], index: 0, kind: input, shape index: {}]
  %s1 = inlined_call_operand.hbm [shape: f32[128,384], index: 1, kind: input, shape index: {}]
  %s2 = inlined_call_operand.hbm [shape: f32[128,128], index: 2, kind: input, shape index: {}]
  %s3 = inlined_call_operand.hbm [shape: f32[16,16], index: 3, kind: input, shape index: {}]
  %s4 = inlined_call_operand.hbm [shape: f32[32,128], index: 4, kind: output, shape index: {}]
  %s5 = sld [smem:[#allocation0]]
  $region65: #{tpu_custom_call.1} parent=0
    _
  %s7 = ssub.s32 1, %s5
  %s8 = scalar_select 0, %s7, %s5
  $region1: #{tpu_custom_call.1} parent=0
    #allocation3 [shape = 'u8[16384]{0}', space=vmem, size = 0x4000, scoped, tag = 'input window, operand 0']
    #allocation4 [shape = 's32[2]{0}', space=sflag, size = 0x8, scoped, tag = 'scoped memory for tpu_custom_call.1']
    #allocation5 [shape = 's32[2]{0}', space=sflag, size = 0x8, scoped, tag = 'scoped memory for tpu_custom_call.1']
    #allocation6 [shape = 'u8[196608]{0}', space=vmem, size = 0x30000, scoped, tag = 'input window, operand 1, single buffered']
    #allocation7 [shape = 's32[1]{0}', space=sflag, size = 0x4, scoped, tag = 'scoped memory for tpu_custom_call.1']
    #allocation8 [shape = 'u8[65536]{0}', space=vmem, size = 0x10000, scoped, tag = 'input window, operand 2, single buffered']
    #allocation9 [shape = 'u8[8192]{0}', space=vmem, size = 0x2000, scoped, tag = 'input window, operand 3, single buffered']
    #allocation10 [shape = 's32[1]{0}', space=sflag, size = 0x4, scoped, tag = 'scoped memory for tpu_custom_call.1']
    #allocation11 [shape = 'u8[16384]{0}', space=vmem, size = 0x4000, scoped, tag = 'output window, operand 0']
    %9 = vsyncpa [#allocation4], 0
    %s10 = scalar_lea.sflag [#allocation4], 1
    %11 = vsyncpa %s10, 0
    %12 = vsyncpa [#allocation7], 0
    %13 = vsyncpa [#allocation10], 0
    %14 = vsyncpa [#allocation5], 0
    %s15 = scalar_lea.sflag [#allocation5], 1
    %16 = vsyncpa %s15, 0
    loop: start=0, step=1, limit=4
    $region2: #{tpu_custom_call.1} parent=1 // loop_pre_header
      _
    $region3: #{tpu_custom_call.1} parent=1 // loop_header
      %s18 = sphi 0, %s22
      %p19 = scmp.ge.s32.totalorder %s18, 4
      %s28 = sphi 0, %s30
      %s31 = sphi 0, %s28
      %s32 = sphi 0, %s31
      %s48 = sphi 0, %s32
      %s52 = sphi 0, %s52
      %s54 = sphi 0, %s52
      %s55 = sphi 0, %s54
      %s69 = sphi 0, %s55
      %s73 = sphi 0, %s73
      %s75 = sphi 0, %s73
      %s76 = sphi 0, %s75
      %s90 = sphi 0, %s76
      %s94 = sphi 0, %s94
      %s96 = sphi 0, %s94
      %s97 = sphi 0, %s96
      %s111 = sphi 0, %s97
      %s117 = sphi 0, %s119
      %s120 = sphi 0, %s117
      %s121 = sphi 0, %s120
      %s137 = sphi 0, %s121
    $region4: #{tpu_custom_call.1} parent=1 // loop_header_branch
      %21 = sbr.rel (%p19) target = $region8
    $region5: #{tpu_custom_call.1} parent=1 // loop_body
      %s23 = ssub.s32 %s18, 1
      %s24 = ssub.s32 %s18, 2
      %s25 = sadd.s32 %s18, 1
      %s26 = ssub.s32 %s18, %s25
      %p27 = scmp.eq.s32.totalorder %s26, 0
      %s29 = sadd.s32 %s28, 1
      %s30 = scalar_select %p27, %s28, %s29
      %p33 = pneg %p27
      %p34 = scmp.eq.s32.totalorder %s18, 1
      %p35 = por %p33, %p34
      %p36 = scmp.ne.s32.totalorder %s28, %s31
      %p37 = scmp.eq.s32.totalorder %s18, 0
      %p38 = por %p36, %p37
      %p39 = scmp.ne.s32.totalorder %s28, %s31
      %p40 = scmp.eq.s32.totalorder %s23, 1
      %p41 = por %p39, %p40
      %p42 = scmp.ne.s32.totalorder %s31, %s32
      %p43 = scmp.eq.s32.totalorder %s23, 0
      %p44 = por %p42, %p43
      %p45 = scmp.ne.s32.totalorder %s31, %s32
      %p46 = scmp.eq.s32.totalorder %s24, 1
      %p47 = por %p45, %p46
      %p49 = scmp.ne.s32.totalorder %s32, %s48
      %p50 = scmp.eq.s32.totalorder %s24, 0
      %p51 = por %p49, %p50
      %s53 = sadd.s32 %s52, 1
      %p56 = scmp.eq.s32.totalorder %s18, 1
      %p57 = scmp.ne.s32.totalorder %s52, %s54
      %p58 = scmp.eq.s32.totalorder %s18, 0
      %p59 = por %p57, %p58
      %p60 = scmp.ne.s32.totalorder %s52, %s54
      %p61 = scmp.eq.s32.totalorder %s23, 1
      %p62 = por %p60, %p61
      %p63 = scmp.ne.s32.totalorder %s54, %s55
      %p64 = scmp.eq.s32.totalorder %s23, 0
      %p65 = por %p63, %p64
      %p66 = scmp.ne.s32.totalorder %s54, %s55
      %p67 = scmp.eq.s32.totalorder %s24, 1
      %p68 = por %p66, %p67
      %p70 = scmp.ne.s32.totalorder %s55, %s69
      %p71 = scmp.eq.s32.totalorder %s24, 0
      %p72 = por %p70, %p71
      %s74 = sadd.s32 %s73, 1
      %p77 = scmp.eq.s32.totalorder %s18, 1
      %p78 = scmp.ne.s32.totalorder %s73, %s75
      %p79 = scmp.eq.s32.totalorder %s18, 0
      %p80 = por %p78, %p79
      %p81 = scmp.ne.s32.totalorder %s73, %s75
      %p82 = scmp.eq.s32.totalorder %s23, 1
      %p83 = por %p81, %p82
      %p84 = scmp.ne.s32.totalorder %s75, %s76
      %p85 = scmp.eq.s32.totalorder %s23, 0
      %p86 = por %p84, %p85
      %p87 = scmp.ne.s32.totalorder %s75, %s76
      %p88 = scmp.eq.s32.totalorder %s24, 1
      %p89 = por %p87, %p88
      %p91 = scmp.ne.s32.totalorder %s76, %s90
      %p92 = scmp.eq.s32.totalorder %s24, 0
      %p93 = por %p91, %p92
      %s95 = sadd.s32 %s94, 1
      %p98 = scmp.eq.s32.totalorder %s18, 1
      %p99 = scmp.ne.s32.totalorder %s94, %s96
      %p100 = scmp.eq.s32.totalorder %s18, 0
      %p101 = por %p99, %p100
      %p102 = scmp.ne.s32.totalorder %s94, %s96
      %p103 = scmp.eq.s32.totalorder %s23, 1
      %p104 = por %p102, %p103
      %p105 = scmp.ne.s32.totalorder %s96, %s97
      %p106 = scmp.eq.s32.totalorder %s23, 0
      %p107 = por %p105, %p106
      %p108 = scmp.ne.s32.totalorder %s96, %s97
      %p109 = scmp.eq.s32.totalorder %s24, 1
      %p110 = por %p108, %p109
      %p112 = scmp.ne.s32.totalorder %s97, %s111
      %p113 = scmp.eq.s32.totalorder %s24, 0
      %p114 = por %p112, %p113
      %s115 = ssub.s32 %s18, %s25
      %p116 = scmp.eq.s32.totalorder %s115, 0
      %s118 = sadd.s32 %s117, 1
      %s119 = scalar_select %p116, %s117, %s118
      %p122 = pneg %p116
      %p123 = scmp.eq.s32.totalorder %s18, 1
      %p124 = por %p122, %p123
      %p125 = scmp.ne.s32.totalorder %s117, %s120
      %p126 = scmp.eq.s32.totalorder %s18, 0
      %p127 = por %p125, %p126
      %p128 = scmp.ne.s32.totalorder %s117, %s120
      %p129 = scmp.eq.s32.totalorder %s23, 1
      %p130 = por %p128, %p129
      %p131 = scmp.ne.s32.totalorder %s120, %s121
      %p132 = scmp.eq.s32.totalorder %s23, 0
      %p133 = por %p131, %p132
      %p134 = scmp.ne.s32.totalorder %s120, %s121
      %p135 = scmp.eq.s32.totalorder %s24, 1
      %p136 = por %p134, %p135
      %p138 = scmp.ne.s32.totalorder %s121, %s137
      %p139 = scmp.eq.s32.totalorder %s24, 0
      %p140 = por %p138, %p139
      %p141 = scmp.le.s32.totalorder 1, %s18
      %p142 = scmp.lt.s32.totalorder %s18, 3
      %p143 = pnand %p141, %p142
      %p144 = pneg %p143
      // Predicated region
      $region9: #{tpu_custom_call.1} parent=5 // pred_check
        _
      $region10: #{tpu_custom_call.1} parent=5 // pred_check_branch
        %146 = sbr.rel (%p143) target = $region12
      $region11: #{tpu_custom_call.1} parent=5 // pred_region
        %s147 = ssub.s32 %s18, 1
        // Predicated region
        $region13: #{tpu_custom_call.1} parent=11 // pred_check
          %p148 = pneg %p65
        $region14: #{tpu_custom_call.1} parent=11 // pred_check_branch
          %150 = sbr.rel (%p148) target = $region16
        $region15: #{tpu_custom_call.1} parent=11 // pred_region
          %152 = vsyncadd [#allocation7], 0
          %s153 = sshll.u32 %s1, 4
          %s154 = int_to_ptr.hbm [resolvable:$true] %s153
          %s155 = sshll.u32 [#allocation6], 4
          %s156 = int_to_ptr.vmem [resolvable:$true] %s155
          %161 = dma.hbm_to_vmem [thread:$0]  %s154, 6144, %s156, [#allocation7], 384, 384, 24
        $region16: #{tpu_custom_call.1} parent=11 // pred_fallthru
          _
        // Predicated region
        $region17: #{tpu_custom_call.1} parent=11 // pred_check
          %p162 = pneg %p86
        $region18: #{tpu_custom_call.1} parent=11 // pred_check_branch
          %164 = sbr.rel (%p162) target = $region20
        $region19: #{tpu_custom_call.1} parent=11 // pred_region
          %166 = vsyncadd [#allocation7], 0
          %s167 = sshll.u32 %s2, 4
          %s168 = int_to_ptr.hbm [resolvable:$true] %s167
          %s169 = sshll.u32 [#allocation8], 4
          %s170 = int_to_ptr.vmem [resolvable:$true] %s169
          %175 = dma.hbm_to_vmem [thread:$0]  %s168, 2048, %s170, [#allocation7], 128, 128, 8
        $region20: #{tpu_custom_call.1} parent=11 // pred_fallthru
          _
        // Predicated region
        $region21: #{tpu_custom_call.1} parent=11 // pred_check
          %p176 = pneg %p107
        $region22: #{tpu_custom_call.1} parent=11 // pred_check_branch
          %178 = sbr.rel (%p176) target = $region24
        $region23: #{tpu_custom_call.1} parent=11 // pred_region
          %180 = vsyncadd [#allocation10], 0
          %s181 = sshll.u32 %s3, 4
          %s182 = int_to_ptr.hbm [resolvable:$true] %s181
          %s183 = sshll.u32 [#allocation9], 4
          %s184 = int_to_ptr.vmem [resolvable:$true] %s183
          %189 = dma.hbm_to_vmem [thread:$0]  %s182, 256, %s184, [#allocation10], 128, 128, 8
        $region24: #{tpu_custom_call.1} parent=11 // pred_fallthru
          _
      $region12: #{tpu_custom_call.1} parent=5 // pred_fallthru
        _
      %p190 = scmp.lt.s32.totalorder %s18, 2
      // Predicated region
      $region25: #{tpu_custom_call.1} parent=5 // pred_check
        %p191 = pneg %p190
      $region26: #{tpu_custom_call.1} parent=5 // pred_check_branch
        %193 = sbr.rel (%p191) target = $region28
      $region27: #{tpu_custom_call.1} parent=5 // pred_region
        // Predicated region
        $region29: #{tpu_custom_call.1} parent=27 // pred_check
          %p194 = pneg %p38
        $region30: #{tpu_custom_call.1} parent=27 // pred_check_branch
          %196 = sbr.rel (%p194) target = $region32
        $region31: #{tpu_custom_call.1} parent=27 // pred_region
          %s197 = sand.u32 %s28, 1
          %s198 = scalar_lea.sflag [#allocation4], %s197
          %s199 = sand.u32 %s28, 1
          %s200 = smul.addr %s199, 16
          %s201 = scalar_lea.vmem [#allocation3], %s200
          %s202 = smul.u32 2, %s18
          %204 = vsyncadd %s198, 0
          %s205 = smul.addr %s202, 8
          %s206 = scalar_lea.hbm %s0, %s205
          %s207 = sshll.u32 %s206, 4
          %s208 = int_to_ptr.hbm [resolvable:$true] %s207
          %s209 = sshll.u32 %s201, 4
          %s210 = int_to_ptr.vmem [resolvable:$true] %s209
          %215 = dma.hbm_to_vmem [thread:$0]  %s208, 256, %s210, %s198, 128, 128, 8
        $region32: #{tpu_custom_call.1} parent=27 // pred_fallthru
          _
      $region28: #{tpu_custom_call.1} parent=5 // pred_fallthru
        _
      %p216 = scmp.le.s32.totalorder 1, %s18
      %p217 = scmp.lt.s32.totalorder %s18, 3
      %p218 = pnand %p216, %p217
      %p219 = pneg %p218
      // Predicated region
      $region33: #{tpu_custom_call.1} parent=5 // pred_check
        _
      $region34: #{tpu_custom_call.1} parent=5 // pred_check_branch
        %221 = sbr.rel (%p218) target = $region36
      $region35: #{tpu_custom_call.1} parent=5 // pred_region
        %s222 = ssub.s32 %s18, 1
        %s223 = sand.u32 %s31, 1
        %s224 = scalar_lea.sflag [#allocation4], %s223
        %s225 = sand.u32 %s31, 1
        %s226 = smul.addr %s225, 16
        %s227 = scalar_lea.vmem [#allocation3], %s226
        // Predicated region
        $region37: #{tpu_custom_call.1} parent=35 // pred_check
          %p228 = pneg %p44
        $region38: #{tpu_custom_call.1} parent=35 // pred_check_branch
          %230 = sbr.rel (%p228) target = $region40
        $region39: #{tpu_custom_call.1} parent=35 // pred_region
          %232 = dma.done %s224, 256
        $region40: #{tpu_custom_call.1} parent=35 // pred_fallthru
          _
        // Predicated region
        $region41: #{tpu_custom_call.1} parent=35 // pred_check
          %p233 = pneg %p65
        $region42: #{tpu_custom_call.1} parent=35 // pred_check_branch
          %235 = sbr.rel (%p233) target = $region44
        $region43: #{tpu_custom_call.1} parent=35 // pred_region
          %237 = dma.done [#allocation7], 6144
        $region44: #{tpu_custom_call.1} parent=35 // pred_fallthru
          _
        // Predicated region
        $region45: #{tpu_custom_call.1} parent=35 // pred_check
          %p238 = pneg %p86
        $region46: #{tpu_custom_call.1} parent=35 // pred_check_branch
          %240 = sbr.rel (%p238) target = $region48
        $region47: #{tpu_custom_call.1} parent=35 // pred_region
          %242 = dma.done [#allocation7], 2048
        $region48: #{tpu_custom_call.1} parent=35 // pred_fallthru
          _
        // Predicated region
        $region49: #{tpu_custom_call.1} parent=35 // pred_check
          %p243 = pneg %p107
        $region50: #{tpu_custom_call.1} parent=35 // pred_check_branch
          %245 = sbr.rel (%p243) target = $region52
        $region51: #{tpu_custom_call.1} parent=35 // pred_region
          %247 = dma.done [#allocation10], 256
        $region52: #{tpu_custom_call.1} parent=35 // pred_fallthru
          _
        %s248 = sand.u32 %s31, 1
        %s249 = scalar_lea.sflag [#allocation4], %s248
        %s250 = sand.u32 %s31, 1
        %s251 = smul.addr %s250, 16
        %s252 = scalar_lea.vmem [#allocation3], %s251
        %p253 = pneg %p44
        %p254 = pneg %p41
        %p255 = pneg %p65
        %p256 = pneg %p62
        %p257 = pneg %p86
        %p258 = pneg %p83
        %p259 = pneg %p107
        %p260 = pneg %p104
        %p261 = pneg %p133
        %p262 = pneg %p130
        %s263 = sand.u32 %s120, 1
        %s264 = scalar_lea.sflag [#allocation5], %s263
        %s265 = sand.u32 %s120, 1
        %s266 = smul.addr %s265, 16
        %s267 = scalar_lea.vmem [#allocation11], %s266
        %s268 = smul.u32 2, %s23
        %s269 = smul.u32 2, %s23
        %v270 = vld [vmem:[%s227] sm:$0xff]
        %v271 = vld [vmem:[%s227 + $0x8] sm:$0xff]
        %v272 = vld [vmem:[#allocation6] sm:$0xff]
        %v273 = vld [vmem:[#allocation6 + $0x8] sm:$0xff]
        %v274 = vld [vmem:[#allocation6 + $0x10] sm:$0xff]
        %v275 = vld [vmem:[#allocation6 + $0x18] sm:$0xff]
        %v276 = vld [vmem:[#allocation6 + $0x20] sm:$0xff]
        %v277 = vld [vmem:[#allocation6 + $0x28] sm:$0xff]
        %v278 = vld [vmem:[#allocation6 + $0x30] sm:$0xff]
        %v279 = vld [vmem:[#allocation6 + $0x38] sm:$0xff]
        %v280 = vld [vmem:[#allocation6 + $0x40] sm:$0xff]
        %v281 = vld [vmem:[#allocation6 + $0x48] sm:$0xff]
        %v282 = vld [vmem:[#allocation6 + $0x50] sm:$0xff]
        %v283 = vld [vmem:[#allocation6 + $0x58] sm:$0xff]
        %v284 = vld [vmem:[#allocation6 + $0x60] sm:$0xff]
        %v285 = vld [vmem:[#allocation6 + $0x68] sm:$0xff]
        %v286 = vld [vmem:[#allocation6 + $0x70] sm:$0xff]
        %v287 = vld [vmem:[#allocation6 + $0x78] sm:$0xff]
        %v288 = vld [vmem:[#allocation6 + $0x80] sm:$0xff]
        %v289 = vld [vmem:[#allocation6 + $0x88] sm:$0xff]
        %v290 = vld [vmem:[#allocation6 + $0x90] sm:$0xff]
        %v291 = vld [vmem:[#allocation6 + $0x98] sm:$0xff]
        %v292 = vld [vmem:[#allocation6 + $0xa0] sm:$0xff]
        %v293 = vld [vmem:[#allocation6 + $0xa8] sm:$0xff]
        %v294 = vld [vmem:[#allocation6 + $0xb0] sm:$0xff]
        %v295 = vld [vmem:[#allocation6 + $0xb8] sm:$0xff]
        %v296 = vld [vmem:[#allocation6 + $0xc0] sm:$0xff]
        %v297 = vld [vmem:[#allocation6 + $0xc8] sm:$0xff]
        %v298 = vld [vmem:[#allocation6 + $0xd0] sm:$0xff]
        %v299 = vld [vmem:[#allocation6 + $0xd8] sm:$0xff]
        %v300 = vld [vmem:[#allocation6 + $0xe0] sm:$0xff]
        %v301 = vld [vmem:[#allocation6 + $0xe8] sm:$0xff]
        %v302 = vld [vmem:[#allocation6 + $0xf0] sm:$0xff]
        %v303 = vld [vmem:[#allocation6 + $0xf8] sm:$0xff]
        %v304 = vld [vmem:[#allocation6 + $0x100] sm:$0xff]
        %v305 = vld [vmem:[#allocation6 + $0x108] sm:$0xff]
        %v306 = vld [vmem:[#allocation6 + $0x110] sm:$0xff]
        %v307 = vld [vmem:[#allocation6 + $0x118] sm:$0xff]
        %v308 = vld [vmem:[#allocation6 + $0x120] sm:$0xff]
        %v309 = vld [vmem:[#allocation6 + $0x128] sm:$0xff]
        %v310 = vld [vmem:[#allocation6 + $0x130] sm:$0xff]
        %v311 = vld [vmem:[#allocation6 + $0x138] sm:$0xff]
        %v312 = vld [vmem:[#allocation6 + $0x140] sm:$0xff]
        %v313 = vld [vmem:[#allocation6 + $0x148] sm:$0xff]
        %v314 = vld [vmem:[#allocation6 + $0x150] sm:$0xff]
        %v315 = vld [vmem:[#allocation6 + $0x158] sm:$0xff]
        %v316 = vld [vmem:[#allocation6 + $0x160] sm:$0xff]
        %v317 = vld [vmem:[#allocation6 + $0x168] sm:$0xff]
        %v318 = vld [vmem:[#allocation6 + $0x170] sm:$0xff]
        %v319 = vld [vmem:[#allocation6 + $0x178] sm:$0xff]
        %320 = vmatpush.msra.mxu0 %v317
        %321 = vmatpush.msra.mxu0 %v314
        %322 = vmatpush.msra.mxu0 %v311
        %323 = vmatpush.msra.mxu0 %v308
        %324 = vmatpush.msra.mxu0 %v305
        %325 = vmatpush.msra.mxu0 %v302
        %326 = vmatpush.msra.mxu0 %v299
        %327 = vmatpush.msra.mxu0 %v296
        %328 = vmatpush.msra.mxu0 %v293
        %329 = vmatpush.msra.mxu0 %v290
        %330 = vmatpush.msra.mxu0 %v287
        %331 = vmatpush.msra.mxu0 %v284
        %332 = vmatpush.msra.mxu0 %v281
        %333 = vmatpush.msra.mxu0 %v278
        %334 = vmatpush.msra.mxu0 %v275
        %335 = vmatpush.msra.mxu0 %v272
        %336 = vmatmul.f32.gmra.mxu0 %v270
        %v337 = vpop.f32.mrf.mxu0
        %v338 = vadd.f32 0.0, %v337
        %339 = vmatmul.f32.gmra.mxu0 %v271
        %v340 = vpop.f32.mrf.mxu0
        %v341 = vadd.f32 0.0, %v340
        %342 = vdwg.mxu0
        %343 = vmatpush.msra.mxu0 %v318
        %344 = vmatpush.msra.mxu0 %v315
        %345 = vmatpush.msra.mxu0 %v312
        %346 = vmatpush.msra.mxu0 %v309
        %347 = vmatpush.msra.mxu0 %v306
        %348 = vmatpush.msra.mxu0 %v303
        %349 = vmatpush.msra.mxu0 %v300
        %350 = vmatpush.msra.mxu0 %v297
        %351 = vmatpush.msra.mxu0 %v294
        %352 = vmatpush.msra.mxu0 %v291
        %353 = vmatpush.msra.mxu0 %v288
        %354 = vmatpush.msra.mxu0 %v285
        %355 = vmatpush.msra.mxu0 %v282
        %356 = vmatpush.msra.mxu0 %v279
        %357 = vmatpush.msra.mxu0 %v276
        %358 = vmatpush.msra.mxu0 %v273
        %359 = vmatmul.f32.gmra.mxu0 %v270
        %v360 = vpop.f32.mrf.mxu0
        %v361 = vadd.f32 0.0, %v360
        %362 = vmatmul.f32.gmra.mxu0 %v271
        %v363 = vpop.f32.mrf.mxu0
        %v364 = vadd.f32 0.0, %v363
        %365 = vdwg.mxu0
        %366 = vmatpush.msra.mxu0 %v319
        %367 = vmatpush.msra.mxu0 %v316
        %368 = vmatpush.msra.mxu0 %v313
        %369 = vmatpush.msra.mxu0 %v310
        %370 = vmatpush.msra.mxu0 %v307
        %371 = vmatpush.msra.mxu0 %v304
        %372 = vmatpush.msra.mxu0 %v301
        %373 = vmatpush.msra.mxu0 %v298
        %374 = vmatpush.msra.mxu0 %v295
        %375 = vmatpush.msra.mxu0 %v292
        %376 = vmatpush.msra.mxu0 %v289
        %377 = vmatpush.msra.mxu0 %v286
        %378 = vmatpush.msra.mxu0 %v283
        %379 = vmatpush.msra.mxu0 %v280
        %380 = vmatpush.msra.mxu0 %v277
        %381 = vmatpush.msra.mxu0 %v274
        %382 = vmatmul.f32.gmra.mxu0 %v270
        %v383 = vpop.f32.mrf.mxu0
        %v384 = vadd.f32 0.0, %v383
        %385 = vmatmul.f32.gmra.mxu0 %v271
        %v386 = vpop.f32.mrf.mxu0
        %v387 = vadd.f32 0.0, %v386
        %388 = vdwg.mxu0
        %v389 = vld [vmem:[#allocation9] sm:$0xff]
        %v390 = vld [vmem:[#allocation9 + $0x8] sm:$0xff]
        %vm391 = vcmask 130048
        %v393 = vsel %vm391, %v338, 0
        %v396 = vsel %vm391, %v341, 0
        %v399 = vsel %vm391, %v361, 0
        %v402 = vsel %vm391, %v364, 0
        %404 = vmatpush.xpose.msra.mxu0 0.0
        %405 = vmatpush.xpose.msra.mxu0 0.0
        %406 = vmatpush.xpose.msra.mxu0 0.0
        %407 = vmatpush.xpose.msra.mxu0 0.0
        %408 = vmatpush.xpose.msra.mxu0 0.0
        %409 = vmatpush.xpose.msra.mxu0 0.0
        %410 = vmatpush.xpose.msra.mxu0 0.0
        %411 = vmatpush.xpose.msra.mxu0 0.0
        %412 = vmatpush.xpose.msra.mxu0 0.0
        %413 = vmatpush.xpose.msra.mxu0 0.0
        %414 = vmatpush.xpose.msra.mxu0 0.0
        %415 = vmatpush.xpose.msra.mxu0 0.0
        %416 = vmatpush.xpose.msra.mxu0 0.0
        %417 = vmatpush.xpose.msra.mxu0 0.0
        %418 = vmatpush.xpose.msra.mxu0 %v402
        %419 = vmatpush.xpose.msra.mxu0 %v399
        %420 = vmatmul.f32.gmra.mxu0 %v393
        %v421 = vpop.f32.mrf.mxu0
        %v422 = vadd.f32 %v389, %v421
        %423 = vmatmul.f32.gmra.mxu0 %v396
        %v424 = vpop.f32.mrf.mxu0
        %v425 = vadd.f32 %v390, %v424
        %426 = vdwg.mxu0
        %v427 = vsel %vm391, %v422, -inf
        %428 = vmax.xlane.f32.xlu0 %v427
        %v429 = vpop.xlane.xlu0 %428
        %v430 = vsel %vm391, %v425, -inf
        %431 = vmax.xlane.f32.xlu0 %v430
        %v432 = vpop.xlane.xlu0 %431
        %v433 = vsub.f32 %v422, %v429
        %v434 = vsub.f32 %v425, %v432
        %v435 = vmul.f32 %v433, 1.442695
        %v436 = vpow.pop %v435
        %v437 = vmul.f32 %v434, 1.442695
        %v438 = vpow.pop %v437
        %v439 = vsel %vm391, %v436, 0.0
        %440 = vadd.xlane.f32.xlu0 %v439
        %v441 = vpop.xlane.xlu0 %440
        %v442 = vsel %vm391, %v438, 0.0
        %443 = vadd.xlane.f32.xlu0 %v442
        %v444 = vpop.xlane.xlu0 %443
        %v445 = vrcp.pop %v441
        %v446 = vrcp.pop %v444
        %v447 = vmul.f32 %v436, %v445
        %v448 = vmul.f32 %v438, %v446
        %v450 = vsel %vm391, %v447, 0
        %v453 = vsel %vm391, %v448, 0
        %455 = vmatpush.msra.mxu0 0.0
        %456 = vmatpush.msra.mxu0 0.0
        %457 = vmatpush.msra.mxu0 0.0
        %458 = vmatpush.msra.mxu0 0.0
        %459 = vmatpush.msra.mxu0 0.0
        %460 = vmatpush.msra.mxu0 0.0
        %461 = vmatpush.msra.mxu0 0.0
        %462 = vmatpush.msra.mxu0 0.0
        %463 = vmatpush.msra.mxu0 0.0
        %464 = vmatpush.msra.mxu0 0.0
        %465 = vmatpush.msra.mxu0 0.0
        %466 = vmatpush.msra.mxu0 0.0
        %467 = vmatpush.msra.mxu0 0.0
        %468 = vmatpush.msra.mxu0 0.0
        %469 = vmatpush.msra.mxu0 %v387
        %470 = vmatpush.msra.mxu0 %v384
        %471 = vmatmul.f32.gmra.mxu0 %v450
        %v472 = vpop.f32.mrf.mxu0
        %v473 = vadd.f32 0.0, %v472
        %474 = vmatmul.f32.gmra.mxu0 %v453
        %v475 = vpop.f32.mrf.mxu0
        %v476 = vadd.f32 0.0, %v475
        %477 = vdwg.mxu0
        %478 = vst.msk [vmem:[#allocation2] sm:$0xff] %vm391, %v473
        %479 = vst.msk [vmem:[#allocation2 + $0x8] sm:$0xff] %vm391, %v476
        %480 = vrot.lane.b32.xlu0 %v338, 112
        %v481 = vpop.permute.xlu0 %480
        %482 = vrot.lane.b32.xlu0 %v341, 112
        %v483 = vpop.permute.xlu0 %482
        %484 = vrot.lane.b32.xlu0 %v361, 112
        %v485 = vpop.permute.xlu0 %484
        %486 = vrot.lane.b32.xlu0 %v364, 112
        %v487 = vpop.permute.xlu0 %486
        %v488 = vsel %vm391, %v481, 0
        %v490 = vsel %vm391, %v483, 0
        %v492 = vsel %vm391, %v485, 0
        %v494 = vsel %vm391, %v487, 0
        %496 = vmatpush.xpose.msra.mxu0 0.0
        %497 = vmatpush.xpose.msra.mxu0 0.0
        %498 = vmatpush.xpose.msra.mxu0 0.0
        %499 = vmatpush.xpose.msra.mxu0 0.0
        %500 = vmatpush.xpose.msra.mxu0 0.0
        %501 = vmatpush.xpose.msra.mxu0 0.0
        %502 = vmatpush.xpose.msra.mxu0 0.0
        %503 = vmatpush.xpose.msra.mxu0 0.0
        %504 = vmatpush.xpose.msra.mxu0 0.0
        %505 = vmatpush.xpose.msra.mxu0 0.0
        %506 = vmatpush.xpose.msra.mxu0 0.0
        %507 = vmatpush.xpose.msra.mxu0 0.0
        %508 = vmatpush.xpose.msra.mxu0 0.0
        %509 = vmatpush.xpose.msra.mxu0 0.0
        %510 = vmatpush.xpose.msra.mxu0 %v494
        %511 = vmatpush.xpose.msra.mxu0 %v492
        %512 = vmatmul.f32.gmra.mxu0 %v488
        %v513 = vpop.f32.mrf.mxu0
        %v514 = vadd.f32 %v389, %v513
        %515 = vmatmul.f32.gmra.mxu0 %v490
        %v516 = vpop.f32.mrf.mxu0
        %v517 = vadd.f32 %v390, %v516
        %518 = vdwg.mxu0
        %v519 = vsel %vm391, %v514, -inf
        %520 = vmax.xlane.f32.xlu0 %v519
        %v521 = vpop.xlane.xlu0 %520
        %v522 = vsel %vm391, %v517, -inf
        %523 = vmax.xlane.f32.xlu0 %v522
        %v524 = vpop.xlane.xlu0 %523
        %v525 = vsub.f32 %v514, %v521
        %v526 = vsub.f32 %v517, %v524
        %v527 = vmul.f32 %v525, 1.442695
        %v528 = vpow.pop %v527
        %v529 = vmul.f32 %v526, 1.442695
        %v530 = vpow.pop %v529
        %v531 = vsel %vm391, %v528, 0.0
        %532 = vadd.xlane.f32.xlu0 %v531
        %v533 = vpop.xlane.xlu0 %532
        %v534 = vsel %vm391, %v530, 0.0
        %535 = vadd.xlane.f32.xlu0 %v534
        %v536 = vpop.xlane.xlu0 %535
        %v537 = vrcp.pop %v533
        %v538 = vrcp.pop %v536
        %v539 = vmul.f32 %v528, %v537
        %v540 = vmul.f32 %v530, %v538
        %543 = vrot.lane.b32.xlu0 %v384, 112
        %v544 = vpop.permute.xlu0 %543
        %545 = vrot.lane.b32.xlu0 %v387, 112
        %v546 = vpop.permute.xlu0 %545
        %v550 = vsel %vm391, %v539, 0
        %v553 = vsel %vm391, %v540, 0
        %555 = vmatpush.msra.mxu0 0.0
        %556 = vmatpush.msra.mxu0 0.0
        %557 = vmatpush.msra.mxu0 0.0
        %558 = vmatpush.msra.mxu0 0.0
        %559 = vmatpush.msra.mxu0 0.0
        %560 = vmatpush.msra.mxu0 0.0
        %561 = vmatpush.msra.mxu0 0.0
        %562 = vmatpush.msra.mxu0 0.0
        %563 = vmatpush.msra.mxu0 0.0
        %564 = vmatpush.msra.mxu0 0.0
        %565 = vmatpush.msra.mxu0 0.0
        %566 = vmatpush.msra.mxu0 0.0
        %567 = vmatpush.msra.mxu0 0.0
        %568 = vmatpush.msra.mxu0 0.0
        %569 = vmatpush.msra.mxu0 %v546
        %570 = vmatpush.msra.mxu0 %v544
        %571 = vmatmul.f32.gmra.mxu0 %v550
        %v572 = vpop.f32.mrf.mxu0
        %v573 = vadd.f32 0.0, %v572
        %574 = vmatmul.f32.gmra.mxu0 %v553
        %v575 = vpop.f32.mrf.mxu0
        %v576 = vadd.f32 0.0, %v575
        %577 = vdwg.mxu0
        %580 = vrot.lane.b32.xlu0 %v573, 16
        %v581 = vpop.permute.xlu0 %580
        %582 = vrot.lane.b32.xlu0 %v576, 16
        %v583 = vpop.permute.xlu0 %582
        %vm586 = vcmask 261248
        %587 = vst.msk [vmem:[#allocation2] sm:$0xff] %vm586, %v581
        %588 = vst.msk [vmem:[#allocation2 + $0x8] sm:$0xff] %vm586, %v583
        %589 = vrot.lane.b32.xlu0 %v338, 96
        %v590 = vpop.permute.xlu0 %589
        %591 = vrot.lane.b32.xlu0 %v341, 96
        %v592 = vpop.permute.xlu0 %591
        %593 = vrot.lane.b32.xlu0 %v361, 96
        %v594 = vpop.permute.xlu0 %593
        %595 = vrot.lane.b32.xlu0 %v364, 96
        %v596 = vpop.permute.xlu0 %595
        %v597 = vsel %vm391, %v590, 0
        %v599 = vsel %vm391, %v592, 0
        %v601 = vsel %vm391, %v594, 0
        %v603 = vsel %vm391, %v596, 0
        %605 = vmatpush.xpose.msra.mxu0 0.0
        %606 = vmatpush.xpose.msra.mxu0 0.0
        %607 = vmatpush.xpose.msra.mxu0 0.0
        %608 = vmatpush.xpose.msra.mxu0 0.0
        %609 = vmatpush.xpose.msra.mxu0 0.0
        %610 = vmatpush.xpose.msra.mxu0 0.0
        %611 = vmatpush.xpose.msra.mxu0 0.0
        %612 = vmatpush.xpose.msra.mxu0 0.0
        %613 = vmatpush.xpose.msra.mxu0 0.0
        %614 = vmatpush.xpose.msra.mxu0 0.0
        %615 = vmatpush.xpose.msra.mxu0 0.0
        %616 = vmatpush.xpose.msra.mxu0 0.0
        %617 = vmatpush.xpose.msra.mxu0 0.0
        %618 = vmatpush.xpose.msra.mxu0 0.0
        %619 = vmatpush.xpose.msra.mxu0 %v603
        %620 = vmatpush.xpose.msra.mxu0 %v601
        %621 = vmatmul.f32.gmra.mxu0 %v597
        %v622 = vpop.f32.mrf.mxu0
        %v623 = vadd.f32 %v389, %v622
        %624 = vmatmul.f32.gmra.mxu0 %v599
        %v625 = vpop.f32.mrf.mxu0
        %v626 = vadd.f32 %v390, %v625
        %627 = vdwg.mxu0
        %v628 = vsel %vm391, %v623, -inf
        %629 = vmax.xlane.f32.xlu0 %v628
        %v630 = vpop.xlane.xlu0 %629
        %v631 = vsel %vm391, %v626, -inf
        %632 = vmax.xlane.f32.xlu0 %v631
        %v633 = vpop.xlane.xlu0 %632
        %v634 = vsub.f32 %v623, %v630
        %v635 = vsub.f32 %v626, %v633
        %v636 = vmul.f32 %v634, 1.442695
        %v637 = vpow.pop %v636
        %v638 = vmul.f32 %v635, 1.442695
        %v639 = vpow.pop %v638
        %v640 = vsel %vm391, %v637, 0.0
        %641 = vadd.xlane.f32.xlu0 %v640
        %v642 = vpop.xlane.xlu0 %641
        %v643 = vsel %vm391, %v639, 0.0
        %644 = vadd.xlane.f32.xlu0 %v643
        %v645 = vpop.xlane.xlu0 %644
        %v646 = vrcp.pop %v642
        %v647 = vrcp.pop %v645
        %v648 = vmul.f32 %v637, %v646
        %v649 = vmul.f32 %v639, %v647
        %650 = vrot.lane.b32.xlu0 %v384, 96
        %v651 = vpop.permute.xlu0 %650
        %652 = vrot.lane.b32.xlu0 %v387, 96
        %v653 = vpop.permute.xlu0 %652
        %v657 = vsel %vm391, %v648, 0
        %v660 = vsel %vm391, %v649, 0
        %662 = vmatpush.msra.mxu0 0.0
        %663 = vmatpush.msra.mxu0 0.0
        %664 = vmatpush.msra.mxu0 0.0
        %665 = vmatpush.msra.mxu0 0.0
        %666 = vmatpush.msra.mxu0 0.0
        %667 = vmatpush.msra.mxu0 0.0
        %668 = vmatpush.msra.mxu0 0.0
        %669 = vmatpush.msra.mxu0 0.0
        %670 = vmatpush.msra.mxu0 0.0
        %671 = vmatpush.msra.mxu0 0.0
        %672 = vmatpush.msra.mxu0 0.0
        %673 = vmatpush.msra.mxu0 0.0
        %674 = vmatpush.msra.mxu0 0.0
        %675 = vmatpush.msra.mxu0 0.0
        %676 = vmatpush.msra.mxu0 %v653
        %677 = vmatpush.msra.mxu0 %v651
        %678 = vmatmul.f32.gmra.mxu0 %v657
        %v679 = vpop.f32.mrf.mxu0
        %v680 = vadd.f32 0.0, %v679
        %681 = vmatmul.f32.gmra.mxu0 %v660
        %v682 = vpop.f32.mrf.mxu0
        %v683 = vadd.f32 0.0, %v682
        %684 = vdwg.mxu0
        %687 = vrot.lane.b32.xlu0 %v680, 32
        %v688 = vpop.permute.xlu0 %687
        %689 = vrot.lane.b32.xlu0 %v683, 32
        %v690 = vpop.permute.xlu0 %689
        %vm693 = vcmask 392448
        %694 = vst.msk [vmem:[#allocation2] sm:$0xff] %vm693, %v688
        %695 = vst.msk [vmem:[#allocation2 + $0x8] sm:$0xff] %vm693, %v690
        %696 = vrot.lane.b32.xlu0 %v338, 80
        %v697 = vpop.permute.xlu0 %696
        %698 = vrot.lane.b32.xlu0 %v341, 80
        %v699 = vpop.permute.xlu0 %698
        %700 = vrot.lane.b32.xlu0 %v361, 80
        %v701 = vpop.permute.xlu0 %700
        %702 = vrot.lane.b32.xlu0 %v364, 80
        %v703 = vpop.permute.xlu0 %702
        %v704 = vsel %vm391, %v697, 0
        %v706 = vsel %vm391, %v699, 0
        %v708 = vsel %vm391, %v701, 0
        %v710 = vsel %vm391, %v703, 0
        %712 = vmatpush.xpose.msra.mxu0 0.0
        %713 = vmatpush.xpose.msra.mxu0 0.0
        %714 = vmatpush.xpose.msra.mxu0 0.0
        %715 = vmatpush.xpose.msra.mxu0 0.0
        %716 = vmatpush.xpose.msra.mxu0 0.0
        %717 = vmatpush.xpose.msra.mxu0 0.0
        %718 = vmatpush.xpose.msra.mxu0 0.0
        %719 = vmatpush.xpose.msra.mxu0 0.0
        %720 = vmatpush.xpose.msra.mxu0 0.0
        %721 = vmatpush.xpose.msra.mxu0 0.0
        %722 = vmatpush.xpose.msra.mxu0 0.0
        %723 = vmatpush.xpose.msra.mxu0 0.0
        %724 = vmatpush.xpose.msra.mxu0 0.0
        %725 = vmatpush.xpose.msra.mxu0 0.0
        %726 = vmatpush.xpose.msra.mxu0 %v710
        %727 = vmatpush.xpose.msra.mxu0 %v708
        %728 = vmatmul.f32.gmra.mxu0 %v704
        %v729 = vpop.f32.mrf.mxu0
        %v730 = vadd.f32 %v389, %v729
        %731 = vmatmul.f32.gmra.mxu0 %v706
        %v732 = vpop.f32.mrf.mxu0
        %v733 = vadd.f32 %v390, %v732
        %734 = vdwg.mxu0
        %v735 = vsel %vm391, %v730, -inf
        %736 = vmax.xlane.f32.xlu0 %v735
        %v737 = vpop.xlane.xlu0 %736
        %v738 = vsel %vm391, %v733, -inf
        %739 = vmax.xlane.f32.xlu0 %v738
        %v740 = vpop.xlane.xlu0 %739
        %v741 = vsub.f32 %v730, %v737
        %v742 = vsub.f32 %v733, %v740
        %v743 = vmul.f32 %v741, 1.442695
        %v744 = vpow.pop %v743
        %v745 = vmul.f32 %v742, 1.442695
        %v746 = vpow.pop %v745
        %v747 = vsel %vm391, %v744, 0.0
        %748 = vadd.xlane.f32.xlu0 %v747
        %v749 = vpop.xlane.xlu0 %748
        %v750 = vsel %vm391, %v746, 0.0
        %751 = vadd.xlane.f32.xlu0 %v750
        %v752 = vpop.xlane.xlu0 %751
        %v753 = vrcp.pop %v749
        %v754 = vrcp.pop %v752
        %v755 = vmul.f32 %v744, %v753
        %v756 = vmul.f32 %v746, %v754
        %757 = vrot.lane.b32.xlu0 %v384, 80
        %v758 = vpop.permute.xlu0 %757
        %759 = vrot.lane.b32.xlu0 %v387, 80
        %v760 = vpop.permute.xlu0 %759
        %v764 = vsel %vm391, %v755, 0
        %v767 = vsel %vm391, %v756, 0
        %769 = vmatpush.msra.mxu0 0.0
        %770 = vmatpush.msra.mxu0 0.0
        %771 = vmatpush.msra.mxu0 0.0
        %772 = vmatpush.msra.mxu0 0.0
        %773 = vmatpush.msra.mxu0 0.0
        %774 = vmatpush.msra.mxu0 0.0
        %775 = vmatpush.msra.mxu0 0.0
        %776 = vmatpush.msra.mxu0 0.0
        %777 = vmatpush.msra.mxu0 0.0
        %778 = vmatpush.msra.mxu0 0.0
        %779 = vmatpush.msra.mxu0 0.0
        %780 = vmatpush.msra.mxu0 0.0
        %781 = vmatpush.msra.mxu0 0.0
        %782 = vmatpush.msra.mxu0 0.0
        %783 = vmatpush.msra.mxu0 %v760
        %784 = vmatpush.msra.mxu0 %v758
        %785 = vmatmul.f32.gmra.mxu0 %v764
        %v786 = vpop.f32.mrf.mxu0
        %v787 = vadd.f32 0.0, %v786
        %788 = vmatmul.f32.gmra.mxu0 %v767
        %v789 = vpop.f32.mrf.mxu0
        %v790 = vadd.f32 0.0, %v789
        %791 = vdwg.mxu0
        %794 = vrot.lane.b32.xlu0 %v787, 48
        %v795 = vpop.permute.xlu0 %794
        %796 = vrot.lane.b32.xlu0 %v790, 48
        %v797 = vpop.permute.xlu0 %796
        %vm800 = vcmask 523648
        %801 = vst.msk [vmem:[#allocation2] sm:$0xff] %vm800, %v795
        %802 = vst.msk [vmem:[#allocation2 + $0x8] sm:$0xff] %vm800, %v797
        %803 = vrot.lane.b32.xlu0 %v338, 64
        %v804 = vpop.permute.xlu0 %803
        %805 = vrot.lane.b32.xlu0 %v341, 64
        %v806 = vpop.permute.xlu0 %805
        %807 = vrot.lane.b32.xlu0 %v361, 64
        %v808 = vpop.permute.xlu0 %807
        %809 = vrot.lane.b32.xlu0 %v364, 64
        %v810 = vpop.permute.xlu0 %809
        %v811 = vsel %vm391, %v804, 0
        %v813 = vsel %vm391, %v806, 0
        %v815 = vsel %vm391, %v808, 0
        %v817 = vsel %vm391, %v810, 0
        %819 = vmatpush.xpose.msra.mxu0 0.0
        %820 = vmatpush.xpose.msra.mxu0 0.0
        %821 = vmatpush.xpose.msra.mxu0 0.0
        %822 = vmatpush.xpose.msra.mxu0 0.0
        %823 = vmatpush.xpose.msra.mxu0 0.0
        %824 = vmatpush.xpose.msra.mxu0 0.0
        %825 = vmatpush.xpose.msra.mxu0 0.0
        %826 = vmatpush.xpose.msra.mxu0 0.0
        %827 = vmatpush.xpose.msra.mxu0 0.0
        %828 = vmatpush.xpose.msra.mxu0 0.0
        %829 = vmatpush.xpose.msra.mxu0 0.0
        %830 = vmatpush.xpose.msra.mxu0 0.0
        %831 = vmatpush.xpose.msra.mxu0 0.0
        %832 = vmatpush.xpose.msra.mxu0 0.0
        %833 = vmatpush.xpose.msra.mxu0 %v817
        %834 = vmatpush.xpose.msra.mxu0 %v815
        %835 = vmatmul.f32.gmra.mxu0 %v811
        %v836 = vpop.f32.mrf.mxu0
        %v837 = vadd.f32 %v389, %v836
        %838 = vmatmul.f32.gmra.mxu0 %v813
        %v839 = vpop.f32.mrf.mxu0
        %v840 = vadd.f32 %v390, %v839
        %841 = vdwg.mxu0
        %v842 = vsel %vm391, %v837, -inf
        %843 = vmax.xlane.f32.xlu0 %v842
        %v844 = vpop.xlane.xlu0 %843
        %v845 = vsel %vm391, %v840, -inf
        %846 = vmax.xlane.f32.xlu0 %v845
        %v847 = vpop.xlane.xlu0 %846
        %v848 = vsub.f32 %v837, %v844
        %v849 = vsub.f32 %v840, %v847
        %v850 = vmul.f32 %v848, 1.442695
        %v851 = vpow.pop %v850
        %v852 = vmul.f32 %v849, 1.442695
        %v853 = vpow.pop %v852
        %v854 = vsel %vm391, %v851, 0.0
        %855 = vadd.xlane.f32.xlu0 %v854
        %v856 = vpop.xlane.xlu0 %855
        %v857 = vsel %vm391, %v853, 0.0
        %858 = vadd.xlane.f32.xlu0 %v857
        %v859 = vpop.xlane.xlu0 %858
        %v860 = vrcp.pop %v856
        %v861 = vrcp.pop %v859
        %v862 = vmul.f32 %v851, %v860
        %v863 = vmul.f32 %v853, %v861
        %864 = vrot.lane.b32.xlu0 %v384, 64
        %v865 = vpop.permute.xlu0 %864
        %866 = vrot.lane.b32.xlu0 %v387, 64
        %v867 = vpop.permute.xlu0 %866
        %v871 = vsel %vm391, %v862, 0
        %v874 = vsel %vm391, %v863, 0
        %876 = vmatpush.msra.mxu0 0.0
        %877 = vmatpush.msra.mxu0 0.0
        %878 = vmatpush.msra.mxu0 0.0
        %879 = vmatpush.msra.mxu0 0.0
        %880 = vmatpush.msra.mxu0 0.0
        %881 = vmatpush.msra.mxu0 0.0
        %882 = vmatpush.msra.mxu0 0.0
        %883 = vmatpush.msra.mxu0 0.0
        %884 = vmatpush.msra.mxu0 0.0
        %885 = vmatpush.msra.mxu0 0.0
        %886 = vmatpush.msra.mxu0 0.0
        %887 = vmatpush.msra.mxu0 0.0
        %888 = vmatpush.msra.mxu0 0.0
        %889 = vmatpush.msra.mxu0 0.0
        %890 = vmatpush.msra.mxu0 %v867
        %891 = vmatpush.msra.mxu0 %v865
        %892 = vmatmul.f32.gmra.mxu0 %v871
        %v893 = vpop.f32.mrf.mxu0
        %v894 = vadd.f32 0.0, %v893
        %895 = vmatmul.f32.gmra.mxu0 %v874
        %v896 = vpop.f32.mrf.mxu0
        %v897 = vadd.f32 0.0, %v896
        %898 = vdwg.mxu0
        %901 = vrot.lane.b32.xlu0 %v894, 64
        %v902 = vpop.permute.xlu0 %901
        %903 = vrot.lane.b32.xlu0 %v897, 64
        %v904 = vpop.permute.xlu0 %903
        %vm907 = vcmask 654848
        %908 = vst.msk [vmem:[#allocation2] sm:$0xff] %vm907, %v902
        %909 = vst.msk [vmem:[#allocation2 + $0x8] sm:$0xff] %vm907, %v904
        %910 = vrot.lane.b32.xlu0 %v338, 48
        %v911 = vpop.permute.xlu0 %910
        %912 = vrot.lane.b32.xlu0 %v341, 48
        %v913 = vpop.permute.xlu0 %912
        %914 = vrot.lane.b32.xlu0 %v361, 48
        %v915 = vpop.permute.xlu0 %914
        %916 = vrot.lane.b32.xlu0 %v364, 48
        %v917 = vpop.permute.xlu0 %916
        %v918 = vsel %vm391, %v911, 0
        %v920 = vsel %vm391, %v913, 0
        %v922 = vsel %vm391, %v915, 0
        %v924 = vsel %vm391, %v917, 0
        %926 = vmatpush.xpose.msra.mxu0 0.0
        %927 = vmatpush.xpose.msra.mxu0 0.0
        %928 = vmatpush.xpose.msra.mxu0 0.0
        %929 = vmatpush.xpose.msra.mxu0 0.0
        %930 = vmatpush.xpose.msra.mxu0 0.0
        %931 = vmatpush.xpose.msra.mxu0 0.0
        %932 = vmatpush.xpose.msra.mxu0 0.0
        %933 = vmatpush.xpose.msra.mxu0 0.0
        %934 = vmatpush.xpose.msra.mxu0 0.0
        %935 = vmatpush.xpose.msra.mxu0 0.0
        %936 = vmatpush.xpose.msra.mxu0 0.0
        %937 = vmatpush.xpose.msra.mxu0 0.0
        %938 = vmatpush.xpose.msra.mxu0 0.0
        %939 = vmatpush.xpose.msra.mxu0 0.0
        %940 = vmatpush.xpose.msra.mxu0 %v924
        %941 = vmatpush.xpose.msra.mxu0 %v922
        %942 = vmatmul.f32.gmra.mxu0 %v918
        %v943 = vpop.f32.mrf.mxu0
        %v944 = vadd.f32 %v389, %v943
        %945 = vmatmul.f32.gmra.mxu0 %v920
        %v946 = vpop.f32.mrf.mxu0
        %v947 = vadd.f32 %v390, %v946
        %948 = vdwg.mxu0
        %v949 = vsel %vm391, %v944, -inf
        %950 = vmax.xlane.f32.xlu0 %v949
        %v951 = vpop.xlane.xlu0 %950
        %v952 = vsel %vm391, %v947, -inf
        %953 = vmax.xlane.f32.xlu0 %v952
        %v954 = vpop.xlane.xlu0 %953
        %v955 = vsub.f32 %v944, %v951
        %v956 = vsub.f32 %v947, %v954
        %v957 = vmul.f32 %v955, 1.442695
        %v958 = vpow.pop %v957
        %v959 = vmul.f32 %v956, 1.442695
        %v960 = vpow.pop %v959
        %v961 = vsel %vm391, %v958, 0.0
        %962 = vadd.xlane.f32.xlu0 %v961
        %v963 = vpop.xlane.xlu0 %962
        %v964 = vsel %vm391, %v960, 0.0
        %965 = vadd.xlane.f32.xlu0 %v964
        %v966 = vpop.xlane.xlu0 %965
        %v967 = vrcp.pop %v963
        %v968 = vrcp.pop %v966
        %v969 = vmul.f32 %v958, %v967
        %v970 = vmul.f32 %v960, %v968
        %971 = vrot.lane.b32.xlu0 %v384, 48
        %v972 = vpop.permute.xlu0 %971
        %973 = vrot.lane.b32.xlu0 %v387, 48
        %v974 = vpop.permute.xlu0 %973
        %v978 = vsel %vm391, %v969, 0
        %v981 = vsel %vm391, %v970, 0
        %983 = vmatpush.msra.mxu0 0.0
        %984 = vmatpush.msra.mxu0 0.0
        %985 = vmatpush.msra.mxu0 0.0
        %986 = vmatpush.msra.mxu0 0.0
        %987 = vmatpush.msra.mxu0 0.0
        %988 = vmatpush.msra.mxu0 0.0
        %989 = vmatpush.msra.mxu0 0.0
        %990 = vmatpush.msra.mxu0 0.0
        %991 = vmatpush.msra.mxu0 0.0
        %992 = vmatpush.msra.mxu0 0.0
        %993 = vmatpush.msra.mxu0 0.0
        %994 = vmatpush.msra.mxu0 0.0
        %995 = vmatpush.msra.mxu0 0.0
        %996 = vmatpush.msra.mxu0 0.0
        %997 = vmatpush.msra.mxu0 %v974
        %998 = vmatpush.msra.mxu0 %v972
        %999 = vmatmul.f32.gmra.mxu0 %v978
        %v1000 = vpop.f32.mrf.mxu0
        %v1001 = vadd.f32 0.0, %v1000
        %1002 = vmatmul.f32.gmra.mxu0 %v981
        %v1003 = vpop.f32.mrf.mxu0
        %v1004 = vadd.f32 0.0, %v1003
        %1005 = vdwg.mxu0
        %1008 = vrot.lane.b32.xlu0 %v1001, 80
        %v1009 = vpop.permute.xlu0 %1008
        %1010 = vrot.lane.b32.xlu0 %v1004, 80
        %v1011 = vpop.permute.xlu0 %1010
        %vm1014 = vcmask 786048
        %1015 = vst.msk [vmem:[#allocation2] sm:$0xff] %vm1014, %v1009
        %1016 = vst.msk [vmem:[#allocation2 + $0x8] sm:$0xff] %vm1014, %v1011
        %1017 = vrot.lane.b32.xlu0 %v338, 32
        %v1018 = vpop.permute.xlu0 %1017
        %1019 = vrot.lane.b32.xlu0 %v341, 32
        %v1020 = vpop.permute.xlu0 %1019
        %1021 = vrot.lane.b32.xlu0 %v361, 32
        %v1022 = vpop.permute.xlu0 %1021
        %1023 = vrot.lane.b32.xlu0 %v364, 32
        %v1024 = vpop.permute.xlu0 %1023
        %v1025 = vsel %vm391, %v1018, 0
        %v1027 = vsel %vm391, %v1020, 0
        %v1029 = vsel %vm391, %v1022, 0
        %v1031 = vsel %vm391, %v1024, 0
        %1033 = vmatpush.xpose.msra.mxu0 0.0
        %1034 = vmatpush.xpose.msra.mxu0 0.0
        %1035 = vmatpush.xpose.msra.mxu0 0.0
        %1036 = vmatpush.xpose.msra.mxu0 0.0
        %1037 = vmatpush.xpose.msra.mxu0 0.0
        %1038 = vmatpush.xpose.msra.mxu0 0.0
        %1039 = vmatpush.xpose.msra.mxu0 0.0
        %1040 = vmatpush.xpose.msra.mxu0 0.0
        %1041 = vmatpush.xpose.msra.mxu0 0.0
        %1042 = vmatpush.xpose.msra.mxu0 0.0
        %1043 = vmatpush.xpose.msra.mxu0 0.0
        %1044 = vmatpush.xpose.msra.mxu0 0.0
        %1045 = vmatpush.xpose.msra.mxu0 0.0
        %1046 = vmatpush.xpose.msra.mxu0 0.0
        %1047 = vmatpush.xpose.msra.mxu0 %v1031
        %1048 = vmatpush.xpose.msra.mxu0 %v1029
        %1049 = vmatmul.f32.gmra.mxu0 %v1025
        %v1050 = vpop.f32.mrf.mxu0
        %v1051 = vadd.f32 %v389, %v1050
        %1052 = vmatmul.f32.gmra.mxu0 %v1027
        %v1053 = vpop.f32.mrf.mxu0
        %v1054 = vadd.f32 %v390, %v1053
        %1055 = vdwg.mxu0
        %v1056 = vsel %vm391, %v1051, -inf
        %1057 = vmax.xlane.f32.xlu0 %v1056
        %v1058 = vpop.xlane.xlu0 %1057
        %v1059 = vsel %vm391, %v1054, -inf
        %1060 = vmax.xlane.f32.xlu0 %v1059
        %v1061 = vpop.xlane.xlu0 %1060
        %v1062 = vsub.f32 %v1051, %v1058
        %v1063 = vsub.f32 %v1054, %v1061
        %v1064 = vmul.f32 %v1062, 1.442695
        %v1065 = vpow.pop %v1064
        %v1066 = vmul.f32 %v1063, 1.442695
        %v1067 = vpow.pop %v1066
        %v1068 = vsel %vm391, %v1065, 0.0
        %1069 = vadd.xlane.f32.xlu0 %v1068
        %v1070 = vpop.xlane.xlu0 %1069
        %v1071 = vsel %vm391, %v1067, 0.0
        %1072 = vadd.xlane.f32.xlu0 %v1071
        %v1073 = vpop.xlane.xlu0 %1072
        %v1074 = vrcp.pop %v1070
        %v1075 = vrcp.pop %v1073
        %v1076 = vmul.f32 %v1065, %v1074
        %v1077 = vmul.f32 %v1067, %v1075
        %1078 = vrot.lane.b32.xlu0 %v384, 32
        %v1079 = vpop.permute.xlu0 %1078
        %1080 = vrot.lane.b32.xlu0 %v387, 32
        %v1081 = vpop.permute.xlu0 %1080
        %v1085 = vsel %vm391, %v1076, 0
        %v1088 = vsel %vm391, %v1077, 0
        %1090 = vmatpush.msra.mxu0 0.0
        %1091 = vmatpush.msra.mxu0 0.0
        %1092 = vmatpush.msra.mxu0 0.0
        %1093 = vmatpush.msra.mxu0 0.0
        %1094 = vmatpush.msra.mxu0 0.0
        %1095 = vmatpush.msra.mxu0 0.0
        %1096 = vmatpush.msra.mxu0 0.0
        %1097 = vmatpush.msra.mxu0 0.0
        %1098 = vmatpush.msra.mxu0 0.0
        %1099 = vmatpush.msra.mxu0 0.0
        %1100 = vmatpush.msra.mxu0 0.0
        %1101 = vmatpush.msra.mxu0 0.0
        %1102 = vmatpush.msra.mxu0 0.0
        %1103 = vmatpush.msra.mxu0 0.0
        %1104 = vmatpush.msra.mxu0 %v1081
        %1105 = vmatpush.msra.mxu0 %v1079
        %1106 = vmatmul.f32.gmra.mxu0 %v1085
        %v1107 = vpop.f32.mrf.mxu0
        %v1108 = vadd.f32 0.0, %v1107
        %1109 = vmatmul.f32.gmra.mxu0 %v1088
        %v1110 = vpop.f32.mrf.mxu0
        %v1111 = vadd.f32 0.0, %v1110
        %1112 = vdwg.mxu0
        %1115 = vrot.lane.b32.xlu0 %v1108, 96
        %v1116 = vpop.permute.xlu0 %1115
        %1117 = vrot.lane.b32.xlu0 %v1111, 96
        %v1118 = vpop.permute.xlu0 %1117
        %vm1121 = vcmask 917248
        %1122 = vst.msk [vmem:[#allocation2] sm:$0xff] %vm1121, %v1116
        %1123 = vst.msk [vmem:[#allocation2 + $0x8] sm:$0xff] %vm1121, %v1118
        %1124 = vrot.lane.b32.xlu0 %v338, 16
        %v1125 = vpop.permute.xlu0 %1124
        %1126 = vrot.lane.b32.xlu0 %v341, 16
        %v1127 = vpop.permute.xlu0 %1126
        %1128 = vrot.lane.b32.xlu0 %v361, 16
        %v1129 = vpop.permute.xlu0 %1128
        %1130 = vrot.lane.b32.xlu0 %v364, 16
        %v1131 = vpop.permute.xlu0 %1130
        %v1132 = vsel %vm391, %v1125, 0
        %v1134 = vsel %vm391, %v1127, 0
        %v1136 = vsel %vm391, %v1129, 0
        %v1138 = vsel %vm391, %v1131, 0
        %1140 = vmatpush.xpose.msra.mxu0 0.0
        %1141 = vmatpush.xpose.msra.mxu0 0.0
        %1142 = vmatpush.xpose.msra.mxu0 0.0
        %1143 = vmatpush.xpose.msra.mxu0 0.0
        %1144 = vmatpush.xpose.msra.mxu0 0.0
        %1145 = vmatpush.xpose.msra.mxu0 0.0
        %1146 = vmatpush.xpose.msra.mxu0 0.0
        %1147 = vmatpush.xpose.msra.mxu0 0.0
        %1148 = vmatpush.xpose.msra.mxu0 0.0
        %1149 = vmatpush.xpose.msra.mxu0 0.0
        %1150 = vmatpush.xpose.msra.mxu0 0.0
        %1151 = vmatpush.xpose.msra.mxu0 0.0
        %1152 = vmatpush.xpose.msra.mxu0 0.0
        %1153 = vmatpush.xpose.msra.mxu0 0.0
        %1154 = vmatpush.xpose.msra.mxu0 %v1138
        %1155 = vmatpush.xpose.msra.mxu0 %v1136
        %1156 = vmatmul.f32.gmra.mxu0 %v1132
        %v1157 = vpop.f32.mrf.mxu0
        %v1158 = vadd.f32 %v389, %v1157
        %1159 = vmatmul.f32.gmra.mxu0 %v1134
        %v1160 = vpop.f32.mrf.mxu0
        %v1161 = vadd.f32 %v390, %v1160
        %1162 = vdwg.mxu0
        %v1163 = vsel %vm391, %v1158, -inf
        %1164 = vmax.xlane.f32.xlu0 %v1163
        %v1165 = vpop.xlane.xlu0 %1164
        %v1166 = vsel %vm391, %v1161, -inf
        %1167 = vmax.xlane.f32.xlu0 %v1166
        %v1168 = vpop.xlane.xlu0 %1167
        %v1169 = vsub.f32 %v1158, %v1165
        %v1170 = vsub.f32 %v1161, %v1168
        %v1171 = vmul.f32 %v1169, 1.442695
        %v1172 = vpow.pop %v1171
        %v1173 = vmul.f32 %v1170, 1.442695
        %v1174 = vpow.pop %v1173
        %v1175 = vsel %vm391, %v1172, 0.0
        %1176 = vadd.xlane.f32.xlu0 %v1175
        %v1177 = vpop.xlane.xlu0 %1176
        %v1178 = vsel %vm391, %v1174, 0.0
        %1179 = vadd.xlane.f32.xlu0 %v1178
        %v1180 = vpop.xlane.xlu0 %1179
        %v1181 = vrcp.pop %v1177
        %v1182 = vrcp.pop %v1180
        %v1183 = vmul.f32 %v1172, %v1181
        %v1184 = vmul.f32 %v1174, %v1182
        %1185 = vrot.lane.b32.xlu0 %v384, 16
        %v1186 = vpop.permute.xlu0 %1185
        %1187 = vrot.lane.b32.xlu0 %v387, 16
        %v1188 = vpop.permute.xlu0 %1187
        %v1192 = vsel %vm391, %v1183, 0
        %v1195 = vsel %vm391, %v1184, 0
        %1197 = vmatpush.msra.mxu0 0.0
        %1198 = vmatpush.msra.mxu0 0.0
        %1199 = vmatpush.msra.mxu0 0.0
        %1200 = vmatpush.msra.mxu0 0.0
        %1201 = vmatpush.msra.mxu0 0.0
        %1202 = vmatpush.msra.mxu0 0.0
        %1203 = vmatpush.msra.mxu0 0.0
        %1204 = vmatpush.msra.mxu0 0.0
        %1205 = vmatpush.msra.mxu0 0.0
        %1206 = vmatpush.msra.mxu0 0.0
        %1207 = vmatpush.msra.mxu0 0.0
        %1208 = vmatpush.msra.mxu0 0.0
        %1209 = vmatpush.msra.mxu0 0.0
        %1210 = vmatpush.msra.mxu0 0.0
        %1211 = vmatpush.msra.mxu0 %v1188
        %1212 = vmatpush.msra.mxu0 %v1186
        %1213 = vmatmul.f32.gmra.mxu0 %v1192
        %v1214 = vpop.f32.mrf.mxu0
        %v1215 = vadd.f32 0.0, %v1214
        %1216 = vmatmul.f32.gmra.mxu0 %v1195
        %v1217 = vpop.f32.mrf.mxu0
        %v1218 = vadd.f32 0.0, %v1217
        %1219 = vdwg.mxu0
        %1222 = vrot.lane.b32.xlu0 %v1215, 112
        %v1223 = vpop.permute.xlu0 %1222
        %1224 = vrot.lane.b32.xlu0 %v1218, 112
        %v1225 = vpop.permute.xlu0 %1224
        %vm1228 = vcmask 1048448
        %1229 = vst.msk [vmem:[#allocation2] sm:$0xff] %vm1228, %v1223
        %1230 = vst.msk [vmem:[#allocation2 + $0x8] sm:$0xff] %vm1228, %v1225
        %v1231 = vld [vmem:[#allocation2] sm:$0xff]
        %v1232 = vld [vmem:[#allocation2 + $0x8] sm:$0xff]
        %v1233 = vld [vmem:[#allocation8] sm:$0xff]
        %v1234 = vld [vmem:[#allocation8 + $0x8] sm:$0xff]
        %v1235 = vld [vmem:[#allocation8 + $0x10] sm:$0xff]
        %v1236 = vld [vmem:[#allocation8 + $0x18] sm:$0xff]
        %v1237 = vld [vmem:[#allocation8 + $0x20] sm:$0xff]
        %v1238 = vld [vmem:[#allocation8 + $0x28] sm:$0xff]
        %v1239 = vld [vmem:[#allocation8 + $0x30] sm:$0xff]
        %v1240 = vld [vmem:[#allocation8 + $0x38] sm:$0xff]
        %v1241 = vld [vmem:[#allocation8 + $0x40] sm:$0xff]
        %v1242 = vld [vmem:[#allocation8 + $0x48] sm:$0xff]
        %v1243 = vld [vmem:[#allocation8 + $0x50] sm:$0xff]
        %v1244 = vld [vmem:[#allocation8 + $0x58] sm:$0xff]
        %v1245 = vld [vmem:[#allocation8 + $0x60] sm:$0xff]
        %v1246 = vld [vmem:[#allocation8 + $0x68] sm:$0xff]
        %v1247 = vld [vmem:[#allocation8 + $0x70] sm:$0xff]
        %v1248 = vld [vmem:[#allocation8 + $0x78] sm:$0xff]
        %1249 = vmatpush.msra.mxu0 %v1248
        %1250 = vmatpush.msra.mxu0 %v1247
        %1251 = vmatpush.msra.mxu0 %v1246
        %1252 = vmatpush.msra.mxu0 %v1245
        %1253 = vmatpush.msra.mxu0 %v1244
        %1254 = vmatpush.msra.mxu0 %v1243
        %1255 = vmatpush.msra.mxu0 %v1242
        %1256 = vmatpush.msra.mxu0 %v1241
        %1257 = vmatpush.msra.mxu0 %v1240
        %1258 = vmatpush.msra.mxu0 %v1239
        %1259 = vmatpush.msra.mxu0 %v1238
        %1260 = vmatpush.msra.mxu0 %v1237
        %1261 = vmatpush.msra.mxu0 %v1236
        %1262 = vmatpush.msra.mxu0 %v1235
        %1263 = vmatpush.msra.mxu0 %v1234
        %1264 = vmatpush.msra.mxu0 %v1233
        %1265 = vmatmul.f32.gmra.mxu0 %v1231
        %v1266 = vpop.f32.mrf.mxu0
        %v1267 = vadd.f32 0.0, %v1266
        %1268 = vmatmul.f32.gmra.mxu0 %v1232
        %v1269 = vpop.f32.mrf.mxu0
        %v1270 = vadd.f32 0.0, %v1269
        %1271 = vdwg.mxu0
        %v1272 = vld [vmem:[%s227] sm:$0xff]
        %v1273 = vld [vmem:[%s227 + $0x8] sm:$0xff]
        %v1274 = vadd.f32 %v1272, %v1267
        %v1275 = vadd.f32 %v1273, %v1270
        %1276 = vst [vmem:[%s267] sm:$0xff] %v1274
        %1277 = vst [vmem:[%s267 + $0x8] sm:$0xff] %v1275
        %s1278 = sand.u32 %s120, 1
        %s1279 = scalar_lea.sflag [#allocation5], %s1278
        %s1280 = sand.u32 %s120, 1
        %s1281 = smul.addr %s1280, 16
        %s1282 = scalar_lea.vmem [#allocation11], %s1281
        // Predicated region
        $region53: #{tpu_custom_call.1} parent=35 // pred_check
          %p1283 = pneg %p130
        $region54: #{tpu_custom_call.1} parent=35 // pred_check_branch
          %1285 = sbr.rel (%p1283) target = $region56
        $region55: #{tpu_custom_call.1} parent=35 // pred_region
          %s1286 = smul.u32 2, %s23
          %1288 = vsyncadd %s1279, 0
          %s1289 = smul.addr %s1286, 8
          %s1290 = scalar_lea.hbm %s4, %s1289
          %s1291 = sshll.u32 %s1282, 4
          %s1292 = int_to_ptr.vmem [resolvable:$true] %s1291
          %s1293 = sshll.u32 %s1290, 4
          %s1294 = int_to_ptr.hbm [resolvable:$true] %s1293
          %1299 = dma.vmem_to_hbm [thread:$0]  %s1292, 256, %s1294, %s1279, 128, 128, 8
        $region56: #{tpu_custom_call.1} parent=35 // pred_fallthru
          _
      $region36: #{tpu_custom_call.1} parent=5 // pred_fallthru
        _
      %p1300 = scmp.le.s32.totalorder 2, %s18
      // Predicated region
      $region57: #{tpu_custom_call.1} parent=5 // pred_check
        %p1301 = pneg %p1300
      $region58: #{tpu_custom_call.1} parent=5 // pred_check_branch
        %1303 = sbr.rel (%p1301) target = $region60
      $region59: #{tpu_custom_call.1} parent=5 // pred_region
        %s1304 = ssub.s32 %s18, 2
        // Predicated region
        $region61: #{tpu_custom_call.1} parent=59 // pred_check
          %p1305 = pneg %p136
        $region62: #{tpu_custom_call.1} parent=59 // pred_check_branch
          %1307 = sbr.rel (%p1305) target = $region64
        $region63: #{tpu_custom_call.1} parent=59 // pred_region
          %s1308 = sand.u32 %s121, 1
          %s1309 = scalar_lea.sflag [#allocation5], %s1308
          %s1310 = sand.u32 %s121, 1
          %s1311 = smul.addr %s1310, 16
          %s1312 = scalar_lea.vmem [#allocation11], %s1311
          %1314 = dma.done %s1309, 256
        $region64: #{tpu_custom_call.1} parent=59 // pred_fallthru
          _
      $region60: #{tpu_custom_call.1} parent=5 // pred_fallthru
        _
    $region6: #{tpu_custom_call.1} parent=1 // loop_footer
      %s22 = sadd.s32 1, %s18
    $region7: #{tpu_custom_call.1} parent=1 // loop_footer_branch
      %17 = sbr.rel target = $region3
    $region8: #{tpu_custom_call.1} parent=1 // loop_exit
      _
    %1315 = vsyncpa [#allocation4], 1
    %s1316 = scalar_lea.sflag [#allocation4], 1
    %1317 = vsyncpa %s1316, 1
    %1318 = vsyncpa [#allocation7], 1
    %1319 = vsyncpa [#allocation10], 1
    %1320 = vsyncpa [#allocation5], 1
    %s1321 = scalar_lea.sflag [#allocation5], 1
    %1322 = vsyncpa %s1321, 1

</llo_original>
